<compile_context>
chip_gen: v7x
topology: tpu7x:2x2x1
jax: 0.10.0
libtpu: 0.0.40
codegen_flags: <defaults>
</compile_context>

<pallas_src>
import functools
import math

import jax
import jax.numpy as jnp
import numpy as np
from jax import lax
from jax.experimental import pallas as pl
from jax.experimental.pallas import tpu as pltpu


def _round_up(n, m):
    return ((n + m - 1) // m) * m


def _largest_divisor(n, cap):
    for d in range(min(n, cap), 0, -1):
        if n % d == 0:
            return d
    return 1


def _tensorcores_per_chip():
    """Split the batch 'parallel' grid axis only where it maps to real extra
    TensorCores (v7x).  On single-TC v5e/v6e a split is pure overhead."""
    try:
        kind = jax.devices()[0].device_kind.lower()
    except Exception:
        return 1
    return 2 if "7" in kind else 1


def _vmem_capacity_bytes():
    try:
        return int(pltpu.get_tpu_info().vmem_capacity_bytes)
    except Exception:
        return 64 * 1024 * 1024          # conservative (v7x per-TC VMEM)


def _pick_time_chunk(T, bt, d_in, Hp, seq_bytes, x_bytes):
    """Largest time chunk whose resident VMEM footprint stays within budget.

    Prefers an exact divisor of T (no padded steps); falls back to a fixed
    chunk + zero padding + in-kernel carry masking for awkward (prime) T.
    Returns (chunk, T_pad)."""
    per_t = bt * (4 * Hp * 4                 # per-chunk pre-gate scratch (f32)
                  + 2 * d_in * x_bytes       # double-buffered x block
                  + 2 * Hp * seq_bytes)      # double-buffered h-seq block
    budget = 12 * 1024 * 1024
    cap = int(max(8, min(64, budget // max(per_t, 1))))
    if T <= cap:
        return T, T
    div = _largest_divisor(T, cap)
    if div >= 8:
        return div, T
    chunk = min(cap, 16)
    return chunk, _round_up(T, chunk)


def _estimate_vmem_bytes(chunk, bt, d_in, Hp, seq_bytes, x_bytes, w_bytes,
                         emit_hseq):
    G = 4 * Hp
    est = 0
    est += 2 * chunk * bt * d_in * x_bytes       # x block (double buffered)
    est += 2 * d_in * G * w_bytes                # W_ih^T
    est += 2 * Hp * G * w_bytes                  # W_hh^T
    est += 2 * G * 4                             # bias
    est += 4 * bt * Hp * 4                       # h0/c0 blocks
    if emit_hseq:
        est += 2 * chunk * bt * Hp * seq_bytes   # h-seq block (double buffered)
    est += 2 * 2 * bt * Hp * 4                   # h_n / c_n blocks
    est += chunk * bt * G * 4 + 2 * bt * Hp * 4  # scratch (pre-gates, h, c)
    return est


# --------------------------------------------------------------------------
# Fused LSTM layer kernel:
#   per time chunk:  pre-gates GEMM (chunk*bt, D) @ (D, 4Hp)  ->  VMEM scratch
#   then the serial recurrence, only h_prev @ W_hh^T per step.
# --------------------------------------------------------------------------
def _fused_lstm_layer_kernel(x_ref, wih_ref, whh_ref, b_ref, h0_ref, c0_ref,
                             *refs, hidden, chunk, t_true, emit_hseq, unroll):
    if emit_hseq:
        hseq_ref, hn_ref, cn_ref, pg_sc, h_sc, c_sc = refs
    else:
        hseq_ref = None
        hn_ref, cn_ref, pg_sc, h_sc, c_sc = refs

    t = pl.program_id(1)
    H = hidden

    @pl.when(t == 0)
    def _():
        h_sc[...] = h0_ref[...].astype(jnp.float32)
        c_sc[...] = c0_ref[...].astype(jnp.float32)

    # ---- fused pre-gate GEMM for the whole chunk (large MXU-friendly M) ----
    tc, bt, d = x_ref.shape
    x2 = x_ref[...].reshape(tc * bt, d).astype(wih_ref.dtype)
    pg = jnp.dot(x2, wih_ref[...], preferred_element_type=jnp.float32)
    pg_sc[...] = (pg + b_ref[...]).reshape(tc, bt, 4 * H)

    w_hh = whh_ref[...]                      # resident for the whole chunk
    masked_tail = t_true is not None         # only when T was zero-padded

    def step(i, carry):
        h_prev, c_prev = carry
        gates = pg_sc[i] + jnp.dot(h_prev.astype(w_hh.dtype), w_hh,
                                   preferred_element_type=jnp.float32)
        i_g = jax.nn.sigmoid(gates[:, 0 * H:1 * H])
        f_g = jax.nn.sigmoid(gates[:, 1 * H:2 * H])
        g_g = jnp.tanh(gates[:, 2 * H:3 * H])
        o_g = jax.nn.sigmoid(gates[:, 3 * H:4 * H])
        c_new = f_g * c_prev + i_g * g_g
        h_new = o_g * jnp.tanh(c_new)
        if masked_tail:                       # freeze carry on padded steps
            valid = (t * chunk + i) < t_true
            c_new = jnp.where(valid, c_new, c_prev)
            h_new = jnp.where(valid, h_new, h_prev)
        if emit_hseq:
            hseq_ref[i] = h_new.astype(hseq_ref.dtype)   # 1 HBM write / chunk
        return h_new, c_new

    h_last, c_last = lax.fori_loop(0, chunk, step, (h_sc[...], c_sc[...]),
                                   unroll=unroll)
    h_sc[...] = h_last
    c_sc[...] = c_last

    @pl.when(t == pl.num_programs(1) - 1)     # final-state write, once
    def _():
        hn_ref[...] = h_last.astype(hn_ref.dtype)
        cn_ref[...] = c_last.astype(cn_ref.dtype)


def _run_lstm_layer(x_tbd, w_ih_t, w_hh_t, bias, h0, c0, *,
                    chunk, t_true, bt, hidden, seq_dtype, emit_hseq,
                    vmem_limit_bytes):
    """x_tbd: (T_pad, Bp, Din) time-major; weights pre-transposed/padded."""
    T_pad, Bp, Din = x_tbd.shape
    Hp = hidden
    G = 4 * Hp
    n_bt = Bp // bt
    n_ch = T_pad // chunk

    # Full unroll unless the per-step live gate values would blow the vregs.
    unroll = chunk if (bt * G * 4) <= (16 * 4096) else min(4, chunk)

    kernel = functools.partial(
        _fused_lstm_layer_kernel, hidden=Hp, chunk=chunk,
        t_true=(None if t_true == T_pad else t_true),
        emit_hseq=emit_hseq, unroll=unroll)

    in_specs = [
        # NOTE: if profiling shows the x-chunk DMA exposed at chunk
        # boundaries, add pipeline_mode=pl.Buffered(3) here (check v7x VMEM).
        pl.BlockSpec((chunk, bt, Din), lambda b, t: (t, b, 0)),   # x chunk
        pl.BlockSpec((Din, G), lambda b, t: (0, 0)),              # W_ih^T
        pl.BlockSpec((Hp, G), lambda b, t: (0, 0)),               # W_hh^T
        pl.BlockSpec((1, G), lambda b, t: (0, 0)),                # bias
        pl.BlockSpec((bt, Hp), lambda b, t: (b, 0)),              # h0 tile
        pl.BlockSpec((bt, Hp), lambda b, t: (b, 0)),              # c0 tile
    ]
    out_shapes, out_specs = [], []
    if emit_hseq:       # last layer's h-sequence is a dead output -> skipped
        out_shapes.append(jax.ShapeDtypeStruct((T_pad, Bp, Hp), seq_dtype))
        out_specs.append(pl.BlockSpec((chunk, bt, Hp), lambda b, t: (t, b, 0)))
    out_shapes += [jax.ShapeDtypeStruct((Bp, Hp), jnp.float32),
                   jax.ShapeDtypeStruct((Bp, Hp), jnp.float32)]
    out_specs += [pl.BlockSpec((bt, Hp), lambda b, t: (b, 0)),
                  pl.BlockSpec((bt, Hp), lambda b, t: (b, 0))]

    grid_spec = pltpu.PrefetchScalarGridSpec(
        num_scalar_prefetch=0,
        grid=(n_bt, n_ch),
        in_specs=in_specs,
        out_specs=out_specs,
        scratch_shapes=[
            pltpu.VMEM((chunk, bt, G), jnp.float32),   # per-chunk pre-gates
            pltpu.VMEM((bt, Hp), jnp.float32),         # running h
            pltpu.VMEM((bt, Hp), jnp.float32),         # running c
        ],
    )

    outs = pl.pallas_call(
        kernel,
        out_shape=tuple(out_shapes),
        grid_spec=grid_spec,
        compiler_params=pltpu.CompilerParams(
            dimension_semantics=("parallel", "arbitrary"),
            vmem_limit_bytes=vmem_limit_bytes),
    )(x_tbd, w_ih_t, w_hh_t, bias, h0, c0)

    if emit_hseq:
        hseq, h_n, c_n = outs
    else:
        hseq, (h_n, c_n) = None, outs
    return hseq, h_n, c_n


# --------------------------------------------------------------------------
# Weight preparation: gate-wise H -> Hp padding + transpose to (K, 4Hp)
# --------------------------------------------------------------------------
def _prep_layer_weights(w_ih, w_hh, b_ih, b_hh, H, Hp, d_in, d_in_pad,
                        weight_dtype):
    def pad_gate_rows(w):
        if Hp == H:
            return w
        w4 = w.reshape(4, H, w.shape[-1])
        return jnp.pad(w4, ((0, 0), (0, Hp - H), (0, 0))).reshape(4 * Hp, -1)

    w_ih = pad_gate_rows(w_ih)                                  # (4Hp, d_in)
    if d_in_pad != d_in:
        w_ih = jnp.pad(w_ih, ((0, 0), (0, d_in_pad - d_in)))
    w_hh = pad_gate_rows(w_hh)                                  # (4Hp, H)
    if Hp != H:
        w_hh = jnp.pad(w_hh, ((0, 0), (0, Hp - H)))             # (4Hp, Hp)
    bias = b_ih + b_hh
    if Hp != H:
        bias = jnp.pad(bias.reshape(4, H), ((0, 0), (0, Hp - H))).reshape(-1)

    w_ih_t = jnp.transpose(w_ih).astype(weight_dtype)           # (d_in_pad, 4Hp)
    w_hh_t = jnp.transpose(w_hh).astype(weight_dtype)           # (Hp, 4Hp)
    bias = bias.reshape(1, -1).astype(jnp.float32)              # (1, 4Hp)
    return w_ih_t, w_hh_t, bias


# --------------------------------------------------------------------------
# Wrapper matching RNNEncoder.forward
# --------------------------------------------------------------------------
def init_lstm_params(key, input_size, hidden_size, num_layers):
    """Deterministic init matching PyTorch LSTM param shapes (uniform(-k, k))."""
    k = 1.0 / math.sqrt(hidden_size)
    params = []
    for layer in range(num_layers):
        d_in = input_size if layer == 0 else hidden_size
        key, k1, k2, k3, k4 = jax.random.split(key, 5)
        w_ih = jax.random.uniform(k1, (4 * hidden_size, d_in), jnp.float32, -k, k)
        w_hh = jax.random.uniform(k2, (4 * hidden_size, hidden_size), jnp.float32, -k, k)
        b_ih = jax.random.uniform(k3, (4 * hidden_size,), jnp.float32, -k, k)
        b_hh = jax.random.uniform(k4, (4 * hidden_size,), jnp.float32, -k, k)
        params.append((w_ih, w_hh, b_ih, b_hh))
    return params


def rnn_encoder_forward(params, x_bt, h0, c0, *,
                        weight_dtype=jnp.bfloat16, seq_dtype=jnp.float32):
    """Pallas implementation of RNNEncoder.forward.

    x_bt : (B, T, input_size)  batch_first like PyTorch
    h0,c0: (num_layers, B, hidden)
    returns (h_n, c_n): each (num_layers, B, hidden), float32

    Default weight_dtype=bfloat16 selects MXU-native matmuls (gate math and
    the h/c carry stay float32); pass weight_dtype=float32 for exact parity.
    seq_dtype=bfloat16 additionally stores the inter-layer hidden sequence in
    bf16 (intentional accuracy/bandwidth trade-off, not exact PyTorch parity).
    """
    B, T, input_size = x_bt.shape
    num_layers = len(params)
    H = params[0][1].shape[1]                      # w_hh: (4H, H)
    Hp = _round_up(H, 128)                         # lane-aligned gate slices

    seq_bytes = jnp.dtype(seq_dtype).itemsize
    w_bytes = jnp.dtype(weight_dtype).itemsize

    # Batch padding / per-core batch tile.  Split only on 2-TC parts (v7x);
    # bf16 h-seq wants 16-row tiles for sublane-dense stores.
    n_tc = _tensorcores_per_chip()
    sub = 16 if seq_bytes == 2 else 8
    Bp = _round_up(max(B, sub), sub * n_tc)
    bt = Bp // n_tc

    # Time chunking: exact divisor when possible, else pad + mask in-kernel.
    d_max = max(input_size, Hp)
    chunk, T_pad = _pick_time_chunk(T, bt, d_max, Hp, seq_bytes, 4)

    est = _estimate_vmem_bytes(chunk, bt, d_max, Hp, seq_bytes, 4, w_bytes, True)
    vmem_limit = int(min(max(2 * est, 32 << 20),
                         int(_vmem_capacity_bytes() * 0.9)))

    # TODO(synk): fold this (B,T,D)->(T,B,D) relayout of x into the layer-0
    # kernel by reading x batch-major through its BlockSpec.
    x = jnp.transpose(x_bt, (1, 0, 2))             # (T, B, D) time-major
    x = jnp.pad(x, ((0, T_pad - T), (0, Bp - B), (0, 0)))
    h0p = jnp.pad(h0, ((0, 0), (0, Bp - B), (0, Hp - H)))
    c0p = jnp.pad(c0, ((0, 0), (0, Bp - B), (0, Hp - H)))

    h_ns, c_ns = [], []
    for layer, (w_ih, w_hh, b_ih, b_hh) in enumerate(params):
        d_in = input_size if layer == 0 else H
        d_in_pad = input_size if layer == 0 else Hp
        w_ih_t, w_hh_t, bias = _prep_layer_weights(
            w_ih, w_hh, b_ih, b_hh, H, Hp, d_in, d_in_pad, weight_dtype)

        emit_hseq = (layer + 1) < num_layers       # skip dead last-layer h-seq
        hseq, h_n, c_n = _run_lstm_layer(
            x, w_ih_t, w_hh_t, bias, h0p[layer], c0p[layer],
            chunk=chunk, t_true=T, bt=bt, hidden=Hp, seq_dtype=seq_dtype,
            emit_hseq=emit_hseq, vmem_limit_bytes=vmem_limit)

        h_ns.append(h_n[:B, :H])
        c_ns.append(c_n[:B, :H])
        if emit_hseq:
            x = hseq                               # already time-major, (T_pad, Bp, Hp)

    return jnp.stack(h_ns, axis=0), jnp.stack(c_ns, axis=0)


# --------------------------------------------------------------------------
# Plain-JAX reference (same math, lax.scan over time)
# --------------------------------------------------------------------------
def _reference_lstm(params, x_bt, h0, c0):
    x = jnp.transpose(x_bt, (1, 0, 2))      # (T, B, D)
    h_ns, c_ns = [], []
    for layer, (w_ih, w_hh, b_ih, b_hh) in enumerate(params):
        H = w_hh.shape[1]

        def step(carry, x_t, w_ih=w_ih, w_hh=w_hh, b_ih=b_ih, b_hh=b_hh, H=H):
            h, c = carry
            g = x_t @ w_ih.T + h @ w_hh.T + b_ih + b_hh
            i = jax.nn.sigmoid(g[:, 0 * H:1 * H])
            f = jax.nn.sigmoid(g[:, 1 * H:2 * H])
            gg = jnp.tanh(g[:, 2 * H:3 * H])
            o = jax.nn.sigmoid(g[:, 3 * H:4 * H])
            c = f * c + i * gg
            h = o * jnp.tanh(c)
            return (h, c), h

        (h_n, c_n), hs = jax.lax.scan(step, (h0[layer], c0[layer]), x)
        x = hs
        h_ns.append(h_n)
        c_ns.append(c_n)
    return jnp.stack(h_ns, axis=0), jnp.stack(c_ns, axis=0)


if __name__ == "__main__":
    B, T, INPUT, HIDDEN, LAYERS = 2, 8, 16, 32, 2

    key = jax.random.PRNGKey(0)
    key, kx, kh, kc, kp = jax.random.split(key, 5)
    x = jax.random.normal(kx, (B, T, INPUT), jnp.float32)
    h0 = jax.random.normal(kh, (LAYERS, B, HIDDEN), jnp.float32)
    c0 = jax.random.normal(kc, (LAYERS, B, HIDDEN), jnp.float32)
    params = init_lstm_params(kp, INPUT, HIDDEN, LAYERS)

    h_ref, c_ref = _reference_lstm(params, x, h0, c0)

    # Exact-math path (f32 weights) — strict check of kernel logic.
    h_f32, c_f32 = rnn_encoder_forward(params, x, h0, c0,
                                       weight_dtype=jnp.float32,
                                       seq_dtype=jnp.float32)
    jax.block_until_ready((h_f32, c_f32))
    np.testing.assert_allclose(np.asarray(h_f32), np.asarray(h_ref),
                               rtol=2e-3, atol=2e-3)
    np.testing.assert_allclose(np.asarray(c_f32), np.asarray(c_ref),
                               rtol=2e-3, atol=2e-3)

    # Default path: bf16 matmul operands (MXU-native), f32 gate math/carries.
    h_n, c_n = rnn_encoder_forward(params, x, h0, c0)
    jax.block_until_ready((h_n, c_n))
    np.testing.assert_allclose(np.asarray(h_n), np.asarray(h_ref),
                               rtol=5e-2, atol=5e-2)
    np.testing.assert_allclose(np.asarray(c_n), np.asarray(c_ref),
                               rtol=5e-2, atol=5e-2)
    assert h_n.shape == (LAYERS, B, HIDDEN) and c_n.shape == (LAYERS, B, HIDDEN)

    # Prime sequence length — exercises multi-chunk recurrence + tail masking.
    T2 = 67
    key, kx2 = jax.random.split(key)
    x2 = jax.random.normal(kx2, (B, T2, INPUT), jnp.float32)
    h_ref2, c_ref2 = _reference_lstm(params, x2, h0, c0)
    h_p, c_p = rnn_encoder_forward(params, x2, h0, c0,
                                   weight_dtype=jnp.float32,
                                   seq_dtype=jnp.float32)
    jax.block_until_ready((h_p, c_p))
    np.testing.assert_allclose(np.asarray(h_p), np.asarray(h_ref2),
                               rtol=2e-2, atol=2e-2)
    np.testing.assert_allclose(np.asarray(c_p), np.asarray(c_ref2),
                               rtol=2e-2, atol=2e-2)

    print("KERNEL_OK")
</pallas_src>

<mosaic_0001>
module attributes {stable_mosaic.version = 11 : i64} {
  func.func @_fused_lstm_layer_kernel(%arg0: i32, %arg1: i32, %arg2: memref<8x8x16xf32, #tpu.memory_space<vmem>>, %arg3: memref<16x512xf32, #tpu.memory_space<vmem>>, %arg4: memref<128x512xf32, #tpu.memory_space<vmem>>, %arg5: memref<1x512xf32, #tpu.memory_space<vmem>>, %arg6: memref<8x128xf32, #tpu.memory_space<vmem>>, %arg7: memref<8x128xf32, #tpu.memory_space<vmem>>, %arg8: memref<8x8x128xf32, #tpu.memory_space<vmem>>, %arg9: memref<8x128xf32, #tpu.memory_space<vmem>>, %arg10: memref<8x128xf32, #tpu.memory_space<vmem>>, %arg11: memref<8x8x512xf32, #tpu.memory_space<vmem>>, %arg12: memref<8x128xf32, #tpu.memory_space<vmem>>, %arg13: memref<8x128xf32, #tpu.memory_space<vmem>>) attributes {dimension_semantics = [#tpu.dimension_semantics<parallel>, #tpu.dimension_semantics<arbitrary>], iteration_bounds = array<i64: 1, 1>, scalar_prefetch = 0 : i64, scratch_operands = 3 : i64, tpu.core_type = #tpu.core_type<tc>, window_params = [{transform_indices = @transform_0, window_bounds = array<i64: 8, 8, 16>}, {pipeline_mode = #tpu.pipeline_mode<synchronous>, transform_indices = @transform_1, window_bounds = array<i64: 16, 512>}, {pipeline_mode = #tpu.pipeline_mode<synchronous>, transform_indices = @transform_2, window_bounds = array<i64: 128, 512>}, {pipeline_mode = #tpu.pipeline_mode<synchronous>, transform_indices = @transform_3, window_bounds = array<i64: 1, 512>}, {transform_indices = @transform_4, window_bounds = array<i64: 8, 128>}, {transform_indices = @transform_5, window_bounds = array<i64: 8, 128>}, {transform_indices = @transform_6, window_bounds = array<i64: 8, 8, 128>}, {transform_indices = @transform_7, window_bounds = array<i64: 8, 128>}, {transform_indices = @transform_8, window_bounds = array<i64: 8, 128>}]} {
    %c0_i32 = arith.constant 0 : i32
    %0 = arith.cmpi eq, %arg1, %c0_i32 : i32
    %1 = arith.extui %0 : i1 to i32
    %c0_i32_0 = arith.constant 0 : i32
    %2 = arith.cmpi ne, %1, %c0_i32_0 : i32
    scf.if %2 {
      %c0_87 = arith.constant 0 : index
      %c0_88 = arith.constant 0 : index
      %292 = vector.load %arg6[%c0_87, %c0_88] : memref<8x128xf32, #tpu.memory_space<vmem>>, vector<8x128xf32>
      %c0_89 = arith.constant 0 : index
      %c0_90 = arith.constant 0 : index
      %293 = vector.load %arg12[%c0_89, %c0_90] : memref<8x128xf32, #tpu.memory_space<vmem>>, vector<8x128xf32>
      tpu.vector_store %arg12[%c0_89, %c0_90], %292 {strides = array<i32>} : memref<8x128xf32, #tpu.memory_space<vmem>>, vector<8x128xf32>,
      %c0_91 = arith.constant 0 : index
      %c0_92 = arith.constant 0 : index
      %294 = vector.load %arg7[%c0_91, %c0_92] : memref<8x128xf32, #tpu.memory_space<vmem>>, vector<8x128xf32>
      %c0_93 = arith.constant 0 : index
      %c0_94 = arith.constant 0 : index
      %295 = vector.load %arg13[%c0_93, %c0_94] : memref<8x128xf32, #tpu.memory_space<vmem>>, vector<8x128xf32>
      tpu.vector_store %arg13[%c0_93, %c0_94], %294 {strides = array<i32>} : memref<8x128xf32, #tpu.memory_space<vmem>>, vector<8x128xf32>,
    } else {
    }
    %c0 = arith.constant 0 : index
    %c0_1 = arith.constant 0 : index
    %c0_2 = arith.constant 0 : index
    %3 = vector.load %arg2[%c0, %c0_1, %c0_2] : memref<8x8x16xf32, #tpu.memory_space<vmem>>, vector<8x8x16xf32>
    %4 = vector.shape_cast %3 : vector<8x8x16xf32> to vector<64x16xf32>
    %c0_3 = arith.constant 0 : index
    %c0_4 = arith.constant 0 : index
    %5 = vector.load %arg3[%c0_3, %c0_4] : memref<16x512xf32, #tpu.memory_space<vmem>>, vector<16x512xf32>
    %cst = arith.constant dense<0.000000e+00> : vector<64x512xf32>
    %6 = tpu.matmul %4, %5, %cst {dimension_numbers = #tpu.dot_dimension_numbers<[1], [0], [0], [1], [0, 0, 1, 1], [], []>} : vector<64x16xf32>, vector<16x512xf32>, vector<64x512xf32> -> vector<64x512xf32>
    %c0_5 = arith.constant 0 : index
    %c0_6 = arith.constant 0 : index
    %7 = vector.load %arg5[%c0_5, %c0_6] : memref<1x512xf32, #tpu.memory_space<vmem>>, vector<1x512xf32>
    %8 = vector.broadcast %7 : vector<1x512xf32> to vector<64x512xf32>
    %9 = arith.addf %6, %8 : vector<64x512xf32>
    %10 = vector.shape_cast %9 : vector<64x512xf32> to vector<8x8x512xf32>
    %c0_7 = arith.constant 0 : index
    %c0_8 = arith.constant 0 : index
    %c0_9 = arith.constant 0 : index
    %11 = vector.load %arg11[%c0_7, %c0_8, %c0_9] : memref<8x8x512xf32, #tpu.memory_space<vmem>>, vector<8x8x512xf32>
    tpu.vector_store %arg11[%c0_7, %c0_8, %c0_9], %10 {strides = array<i32>} : memref<8x8x512xf32, #tpu.memory_space<vmem>>, vector<8x8x512xf32>,
    %c0_10 = arith.constant 0 : index
    %c0_11 = arith.constant 0 : index
    %12 = vector.load %arg4[%c0_10, %c0_11] : memref<128x512xf32, #tpu.memory_space<vmem>>, vector<128x512xf32>
    %c0_12 = arith.constant 0 : index
    %c0_13 = arith.constant 0 : index
    %13 = vector.load %arg12[%c0_12, %c0_13] : memref<8x128xf32, #tpu.memory_space<vmem>>, vector<8x128xf32>
    %c0_14 = arith.constant 0 : index
    %c0_15 = arith.constant 0 : index
    %14 = vector.load %arg13[%c0_14, %c0_15] : memref<8x128xf32, #tpu.memory_space<vmem>>, vector<8x128xf32>
    %c0_i32_16 = arith.constant 0 : i32
    %15 = arith.index_cast %c0_i32_16 : i32 to index
    %c0_17 = arith.constant 0 : index
    %c0_18 = arith.constant 0 : index
    %16 = vector.load %arg11[%15, %c0_17, %c0_18] : memref<8x8x512xf32, #tpu.memory_space<vmem>>, vector<1x8x512xf32>
    %17 = vector.shape_cast %16 : vector<1x8x512xf32> to vector<8x512xf32>
    %cst_19 = arith.constant dense<0.000000e+00> : vector<8x512xf32>
    %18 = tpu.matmul %13, %12, %cst_19 {dimension_numbers = #tpu.dot_dimension_numbers<[1], [0], [0], [1], [0, 0, 1, 1], [], []>} : vector<8x128xf32>, vector<128x512xf32>, vector<8x512xf32> -> vector<8x512xf32>
    %19 = arith.addf %17, %18 : vector<8x512xf32>
    %20 = vector.extract_strided_slice %19 {offsets = [0, 0], sizes = [8, 128], strides = [1, 1]} : vector<8x512xf32> to vector<8x128xf32>
    %21 = arith.negf %20 : vector<8x128xf32>
    %22 = math.exp %21 : vector<8x128xf32>
    %cst_20 = arith.constant 1.000000e+00 : f32
    %23 = vector.broadcast %cst_20 : f32 to vector<8x128xf32>
    %24 = arith.addf %23, %22 : vector<8x128xf32>
    %25 = arith.divf %23, %24 : vector<8x128xf32>
    %26 = vector.extract_strided_slice %19 {offsets = [0, 128], sizes = [8, 128], strides = [1, 1]} : vector<8x512xf32> to vector<8x128xf32>
    %27 = arith.negf %26 : vector<8x128xf32>
    %28 = math.exp %27 : vector<8x128xf32>
    %cst_21 = arith.constant 1.000000e+00 : f32
    %29 = vector.broadcast %cst_21 : f32 to vector<8x128xf32>
    %30 = arith.addf %29, %28 : vector<8x128xf32>
    %31 = arith.divf %29, %30 : vector<8x128xf32>
    %32 = vector.extract_strided_slice %19 {offsets = [0, 256], sizes = [8, 128], strides = [1, 1]} : vector<8x512xf32> to vector<8x128xf32>
    %33 = math.tanh %32 : vector<8x128xf32>
    %34 = vector.extract_strided_slice %19 {offsets = [0, 384], sizes = [8, 128], strides = [1, 1]} : vector<8x512xf32> to vector<8x128xf32>
    %35 = arith.negf %34 : vector<8x128xf32>
    %36 = math.exp %35 : vector<8x128xf32>
    %cst_22 = arith.constant 1.000000e+00 : f32
    %37 = vector.broadcast %cst_22 : f32 to vector<8x128xf32>
    %38 = arith.addf %37, %36 : vector<8x128xf32>
    %39 = arith.divf %37, %38 : vector<8x128xf32>
    %40 = arith.mulf %31, %14 : vector<8x128xf32>
    %41 = arith.mulf %25, %33 : vector<8x128xf32>
    %42 = arith.addf %40, %41 : vector<8x128xf32>
    %43 = math.tanh %42 : vector<8x128xf32>
    %44 = arith.mulf %39, %43 : vector<8x128xf32>
    %45 = arith.index_cast %c0_i32_16 : i32 to index
    %c0_23 = arith.constant 0 : index
    %c0_24 = arith.constant 0 : index
    %46 = vector.load %arg8[%45, %c0_23, %c0_24] : memref<8x8x128xf32, #tpu.memory_space<vmem>>, vector<1x8x128xf32>
    %47 = vector.shape_cast %46 : vector<1x8x128xf32> to vector<8x128xf32>
    %48 = vector.shape_cast %44 : vector<8x128xf32> to vector<1x8x128xf32>
    tpu.vector_store %arg8[%45, %c0_23, %c0_24], %48 {strides = array<i32>} : memref<8x8x128xf32, #tpu.memory_space<vmem>>, vector<1x8x128xf32>,
    %c1_i32 = arith.constant 1 : i32
    %49 = arith.index_cast %c1_i32 : i32 to index
    %c0_25 = arith.constant 0 : index
    %c0_26 = arith.constant 0 : index
    %50 = vector.load %arg11[%49, %c0_25, %c0_26] : memref<8x8x512xf32, #tpu.memory_space<vmem>>, vector<1x8x512xf32>
    %51 = vector.shape_cast %50 : vector<1x8x512xf32> to vector<8x512xf32>
    %cst_27 = arith.constant dense<0.000000e+00> : vector<8x512xf32>
    %52 = tpu.matmul %44, %12, %cst_27 {dimension_numbers = #tpu.dot_dimension_numbers<[1], [0], [0], [1], [0, 0, 1, 1], [], []>} : vector<8x128xf32>, vector<128x512xf32>, vector<8x512xf32> -> vector<8x512xf32>
    %53 = arith.addf %51, %52 : vector<8x512xf32>
    %54 = vector.extract_strided_slice %53 {offsets = [0, 0], sizes = [8, 128], strides = [1, 1]} : vector<8x512xf32> to vector<8x128xf32>
    %55 = arith.negf %54 : vector<8x128xf32>
    %56 = math.exp %55 : vector<8x128xf32>
    %cst_28 = arith.constant 1.000000e+00 : f32
    %57 = vector.broadcast %cst_28 : f32 to vector<8x128xf32>
    %58 = arith.addf %57, %56 : vector<8x128xf32>
    %59 = arith.divf %57, %58 : vector<8x128xf32>
    %60 = vector.extract_strided_slice %53 {offsets = [0, 128], sizes = [8, 128], strides = [1, 1]} : vector<8x512xf32> to vector<8x128xf32>
    %61 = arith.negf %60 : vector<8x128xf32>
    %62 = math.exp %61 : vector<8x128xf32>
    %cst_29 = arith.constant 1.000000e+00 : f32
    %63 = vector.broadcast %cst_29 : f32 to vector<8x128xf32>
    %64 = arith.addf %63, %62 : vector<8x128xf32>
    %65 = arith.divf %63, %64 : vector<8x128xf32>
    %66 = vector.extract_strided_slice %53 {offsets = [0, 256], sizes = [8, 128], strides = [1, 1]} : vector<8x512xf32> to vector<8x128xf32>
    %67 = math.tanh %66 : vector<8x128xf32>
    %68 = vector.extract_strided_slice %53 {offsets = [0, 384], sizes = [8, 128], strides = [1, 1]} : vector<8x512xf32> to vector<8x128xf32>
    %69 = arith.negf %68 : vector<8x128xf32>
    %70 = math.exp %69 : vector<8x128xf32>
    %cst_30 = arith.constant 1.000000e+00 : f32
    %71 = vector.broadcast %cst_30 : f32 to vector<8x128xf32>
    %72 = arith.addf %71, %70 : vector<8x128xf32>
    %73 = arith.divf %71, %72 : vector<8x128xf32>
    %74 = arith.mulf %65, %42 : vector<8x128xf32>
    %75 = arith.mulf %59, %67 : vector<8x128xf32>
    %76 = arith.addf %74, %75 : vector<8x128xf32>
    %77 = math.tanh %76 : vector<8x128xf32>
    %78 = arith.mulf %73, %77 : vector<8x128xf32>
    %79 = arith.index_cast %c1_i32 : i32 to index
    %c0_31 = arith.constant 0 : index
    %c0_32 = arith.constant 0 : index
    %80 = vector.load %arg8[%79, %c0_31, %c0_32] : memref<8x8x128xf32, #tpu.memory_space<vmem>>, vector<1x8x128xf32>
    %81 = vector.shape_cast %80 : vector<1x8x128xf32> to vector<8x128xf32>
    %82 = vector.shape_cast %78 : vector<8x128xf32> to vector<1x8x128xf32>
    tpu.vector_store %arg8[%79, %c0_31, %c0_32], %82 {strides = array<i32>} : memref<8x8x128xf32, #tpu.memory_space<vmem>>, vector<1x8x128xf32>,
    %c2_i32 = arith.constant 2 : i32
    %83 = arith.index_cast %c2_i32 : i32 to index
    %c0_33 = arith.constant 0 : index
    %c0_34 = arith.constant 0 : index
    %84 = vector.load %arg11[%83, %c0_33, %c0_34] : memref<8x8x512xf32, #tpu.memory_space<vmem>>, vector<1x8x512xf32>
    %85 = vector.shape_cast %84 : vector<1x8x512xf32> to vector<8x512xf32>
    %cst_35 = arith.constant dense<0.000000e+00> : vector<8x512xf32>
    %86 = tpu.matmul %78, %12, %cst_35 {dimension_numbers = #tpu.dot_dimension_numbers<[1], [0], [0], [1], [0, 0, 1, 1], [], []>} : vector<8x128xf32>, vector<128x512xf32>, vector<8x512xf32> -> vector<8x512xf32>
    %87 = arith.addf %85, %86 : vector<8x512xf32>
    %88 = vector.extract_strided_slice %87 {offsets = [0, 0], sizes = [8, 128], strides = [1, 1]} : vector<8x512xf32> to vector<8x128xf32>
    %89 = arith.negf %88 : vector<8x128xf32>
    %90 = math.exp %89 : vector<8x128xf32>
    %cst_36 = arith.constant 1.000000e+00 : f32
    %91 = vector.broadcast %cst_36 : f32 to vector<8x128xf32>
    %92 = arith.addf %91, %90 : vector<8x128xf32>
    %93 = arith.divf %91, %92 : vector<8x128xf32>
    %94 = vector.extract_strided_slice %87 {offsets = [0, 128], sizes = [8, 128], strides = [1, 1]} : vector<8x512xf32> to vector<8x128xf32>
    %95 = arith.negf %94 : vector<8x128xf32>
    %96 = math.exp %95 : vector<8x128xf32>
    %cst_37 = arith.constant 1.000000e+00 : f32
    %97 = vector.broadcast %cst_37 : f32 to vector<8x128xf32>
    %98 = arith.addf %97, %96 : vector<8x128xf32>
    %99 = arith.divf %97, %98 : vector<8x128xf32>
    %100 = vector.extract_strided_slice %87 {offsets = [0, 256], sizes = [8, 128], strides = [1, 1]} : vector<8x512xf32> to vector<8x128xf32>
    %101 = math.tanh %100 : vector<8x128xf32>
    %102 = vector.extract_strided_slice %87 {offsets = [0, 384], sizes = [8, 128], strides = [1, 1]} : vector<8x512xf32> to vector<8x128xf32>
    %103 = arith.negf %102 : vector<8x128xf32>
    %104 = math.exp %103 : vector<8x128xf32>
    %cst_38 = arith.constant 1.000000e+00 : f32
    %105 = vector.broadcast %cst_38 : f32 to vector<8x128xf32>
    %106 = arith.addf %105, %104 : vector<8x128xf32>
    %107 = arith.divf %105, %106 : vector<8x128xf32>
    %108 = arith.mulf %99, %76 : vector<8x128xf32>
    %109 = arith.mulf %93, %101 : vector<8x128xf32>
    %110 = arith.addf %108, %109 : vector<8x128xf32>
    %111 = math.tanh %110 : vector<8x128xf32>
    %112 = arith.mulf %107, %111 : vector<8x128xf32>
    %113 = arith.index_cast %c2_i32 : i32 to index
    %c0_39 = arith.constant 0 : index
    %c0_40 = arith.constant 0 : index
    %114 = vector.load %arg8[%113, %c0_39, %c0_40] : memref<8x8x128xf32, #tpu.memory_space<vmem>>, vector<1x8x128xf32>
    %115 = vector.shape_cast %114 : vector<1x8x128xf32> to vector<8x128xf32>
    %116 = vector.shape_cast %112 : vector<8x128xf32> to vector<1x8x128xf32>
    tpu.vector_store %arg8[%113, %c0_39, %c0_40], %116 {strides = array<i32>} : memref<8x8x128xf32, #tpu.memory_space<vmem>>, vector<1x8x128xf32>,
    %c3_i32 = arith.constant 3 : i32
    %117 = arith.index_cast %c3_i32 : i32 to index
    %c0_41 = arith.constant 0 : index
    %c0_42 = arith.constant 0 : index
    %118 = vector.load %arg11[%117, %c0_41, %c0_42] : memref<8x8x512xf32, #tpu.memory_space<vmem>>, vector<1x8x512xf32>
    %119 = vector.shape_cast %118 : vector<1x8x512xf32> to vector<8x512xf32>
    %cst_43 = arith.constant dense<0.000000e+00> : vector<8x512xf32>
    %120 = tpu.matmul %112, %12, %cst_43 {dimension_numbers = #tpu.dot_dimension_numbers<[1], [0], [0], [1], [0, 0, 1, 1], [], []>} : vector<8x128xf32>, vector<128x512xf32>, vector<8x512xf32> -> vector<8x512xf32>
    %121 = arith.addf %119, %120 : vector<8x512xf32>
    %122 = vector.extract_strided_slice %121 {offsets = [0, 0], sizes = [8, 128], strides = [1, 1]} : vector<8x512xf32> to vector<8x128xf32>
    %123 = arith.negf %122 : vector<8x128xf32>
    %124 = math.exp %123 : vector<8x128xf32>
    %cst_44 = arith.constant 1.000000e+00 : f32
    %125 = vector.broadcast %cst_44 : f32 to vector<8x128xf32>
    %126 = arith.addf %125, %124 : vector<8x128xf32>
    %127 = arith.divf %125, %126 : vector<8x128xf32>
    %128 = vector.extract_strided_slice %121 {offsets = [0, 128], sizes = [8, 128], strides = [1, 1]} : vector<8x512xf32> to vector<8x128xf32>
    %129 = arith.negf %128 : vector<8x128xf32>
    %130 = math.exp %129 : vector<8x128xf32>
    %cst_45 = arith.constant 1.000000e+00 : f32
    %131 = vector.broadcast %cst_45 : f32 to vector<8x128xf32>
    %132 = arith.addf %131, %130 : vector<8x128xf32>
    %133 = arith.divf %131, %132 : vector<8x128xf32>
    %134 = vector.extract_strided_slice %121 {offsets = [0, 256], sizes = [8, 128], strides = [1, 1]} : vector<8x512xf32> to vector<8x128xf32>
    %135 = math.tanh %134 : vector<8x128xf32>
    %136 = vector.extract_strided_slice %121 {offsets = [0, 384], sizes = [8, 128], strides = [1, 1]} : vector<8x512xf32> to vector<8x128xf32>
    %137 = arith.negf %136 : vector<8x128xf32>
    %138 = math.exp %137 : vector<8x128xf32>
    %cst_46 = arith.constant 1.000000e+00 : f32
    %139 = vector.broadcast %cst_46 : f32 to vector<8x128xf32>
    %140 = arith.addf %139, %138 : vector<8x128xf32>
    %141 = arith.divf %139, %140 : vector<8x128xf32>
    %142 = arith.mulf %133, %110 : vector<8x128xf32>
    %143 = arith.mulf %127, %135 : vector<8x128xf32>
    %144 = arith.addf %142, %143 : vector<8x128xf32>
    %145 = math.tanh %144 : vector<8x128xf32>
    %146 = arith.mulf %141, %145 : vector<8x128xf32>
    %147 = arith.index_cast %c3_i32 : i32 to index
    %c0_47 = arith.constant 0 : index
    %c0_48 = arith.constant 0 : index
    %148 = vector.load %arg8[%147, %c0_47, %c0_48] : memref<8x8x128xf32, #tpu.memory_space<vmem>>, vector<1x8x128xf32>
    %149 = vector.shape_cast %148 : vector<1x8x128xf32> to vector<8x128xf32>
    %150 = vector.shape_cast %146 : vector<8x128xf32> to vector<1x8x128xf32>
    tpu.vector_store %arg8[%147, %c0_47, %c0_48], %150 {strides = array<i32>} : memref<8x8x128xf32, #tpu.memory_space<vmem>>, vector<1x8x128xf32>,
    %c4_i32 = arith.constant 4 : i32
    %151 = arith.index_cast %c4_i32 : i32 to index
    %c0_49 = arith.constant 0 : index
    %c0_50 = arith.constant 0 : index
    %152 = vector.load %arg11[%151, %c0_49, %c0_50] : memref<8x8x512xf32, #tpu.memory_space<vmem>>, vector<1x8x512xf32>
    %153 = vector.shape_cast %152 : vector<1x8x512xf32> to vector<8x512xf32>
    %cst_51 = arith.constant dense<0.000000e+00> : vector<8x512xf32>
    %154 = tpu.matmul %146, %12, %cst_51 {dimension_numbers = #tpu.dot_dimension_numbers<[1], [0], [0], [1], [0, 0, 1, 1], [], []>} : vector<8x128xf32>, vector<128x512xf32>, vector<8x512xf32> -> vector<8x512xf32>
    %155 = arith.addf %153, %154 : vector<8x512xf32>
    %156 = vector.extract_strided_slice %155 {offsets = [0, 0], sizes = [8, 128], strides = [1, 1]} : vector<8x512xf32> to vector<8x128xf32>
    %157 = arith.negf %156 : vector<8x128xf32>
    %158 = math.exp %157 : vector<8x128xf32>
    %cst_52 = arith.constant 1.000000e+00 : f32
    %159 = vector.broadcast %cst_52 : f32 to vector<8x128xf32>
    %160 = arith.addf %159, %158 : vector<8x128xf32>
    %161 = arith.divf %159, %160 : vector<8x128xf32>
    %162 = vector.extract_strided_slice %155 {offsets = [0, 128], sizes = [8, 128], strides = [1, 1]} : vector<8x512xf32> to vector<8x128xf32>
    %163 = arith.negf %162 : vector<8x128xf32>
    %164 = math.exp %163 : vector<8x128xf32>
    %cst_53 = arith.constant 1.000000e+00 : f32
    %165 = vector.broadcast %cst_53 : f32 to vector<8x128xf32>
    %166 = arith.addf %165, %164 : vector<8x128xf32>
    %167 = arith.divf %165, %166 : vector<8x128xf32>
    %168 = vector.extract_strided_slice %155 {offsets = [0, 256], sizes = [8, 128], strides = [1, 1]} : vector<8x512xf32> to vector<8x128xf32>
    %169 = math.tanh %168 : vector<8x128xf32>
    %170 = vector.extract_strided_slice %155 {offsets = [0, 384], sizes = [8, 128], strides = [1, 1]} : vector<8x512xf32> to vector<8x128xf32>
    %171 = arith.negf %170 : vector<8x128xf32>
    %172 = math.exp %171 : vector<8x128xf32>
    %cst_54 = arith.constant 1.000000e+00 : f32
    %173 = vector.broadcast %cst_54 : f32 to vector<8x128xf32>
    %174 = arith.addf %173, %172 : vector<8x128xf32>
    %175 = arith.divf %173, %174 : vector<8x128xf32>
    %176 = arith.mulf %167, %144 : vector<8x128xf32>
    %177 = arith.mulf %161, %169 : vector<8x128xf32>
    %178 = arith.addf %176, %177 : vector<8x128xf32>
    %179 = math.tanh %178 : vector<8x128xf32>
    %180 = arith.mulf %175, %179 : vector<8x128xf32>
    %181 = arith.index_cast %c4_i32 : i32 to index
    %c0_55 = arith.constant 0 : index
    %c0_56 = arith.constant 0 : index
    %182 = vector.load %arg8[%181, %c0_55, %c0_56] : memref<8x8x128xf32, #tpu.memory_space<vmem>>, vector<1x8x128xf32>
    %183 = vector.shape_cast %182 : vector<1x8x128xf32> to vector<8x128xf32>
    %184 = vector.shape_cast %180 : vector<8x128xf32> to vector<1x8x128xf32>
    tpu.vector_store %arg8[%181, %c0_55, %c0_56], %184 {strides = array<i32>} : memref<8x8x128xf32, #tpu.memory_space<vmem>>, vector<1x8x128xf32>,
    %c5_i32 = arith.constant 5 : i32
    %185 = arith.index_cast %c5_i32 : i32 to index
    %c0_57 = arith.constant 0 : index
    %c0_58 = arith.constant 0 : index
    %186 = vector.load %arg11[%185, %c0_57, %c0_58] : memref<8x8x512xf32, #tpu.memory_space<vmem>>, vector<1x8x512xf32>
    %187 = vector.shape_cast %186 : vector<1x8x512xf32> to vector<8x512xf32>
    %cst_59 = arith.constant dense<0.000000e+00> : vector<8x512xf32>
    %188 = tpu.matmul %180, %12, %cst_59 {dimension_numbers = #tpu.dot_dimension_numbers<[1], [0], [0], [1], [0, 0, 1, 1], [], []>} : vector<8x128xf32>, vector<128x512xf32>, vector<8x512xf32> -> vector<8x512xf32>
    %189 = arith.addf %187, %188 : vector<8x512xf32>
    %190 = vector.extract_strided_slice %189 {offsets = [0, 0], sizes = [8, 128], strides = [1, 1]} : vector<8x512xf32> to vector<8x128xf32>
    %191 = arith.negf %190 : vector<8x128xf32>
    %192 = math.exp %191 : vector<8x128xf32>
    %cst_60 = arith.constant 1.000000e+00 : f32
    %193 = vector.broadcast %cst_60 : f32 to vector<8x128xf32>
    %194 = arith.addf %193, %192 : vector<8x128xf32>
    %195 = arith.divf %193, %194 : vector<8x128xf32>
    %196 = vector.extract_strided_slice %189 {offsets = [0, 128], sizes = [8, 128], strides = [1, 1]} : vector<8x512xf32> to vector<8x128xf32>
    %197 = arith.negf %196 : vector<8x128xf32>
    %198 = math.exp %197 : vector<8x128xf32>
    %cst_61 = arith.constant 1.000000e+00 : f32
    %199 = vector.broadcast %cst_61 : f32 to vector<8x128xf32>
    %200 = arith.addf %199, %198 : vector<8x128xf32>
    %201 = arith.divf %199, %200 : vector<8x128xf32>
    %202 = vector.extract_strided_slice %189 {offsets = [0, 256], sizes = [8, 128], strides = [1, 1]} : vector<8x512xf32> to vector<8x128xf32>
    %203 = math.tanh %202 : vector<8x128xf32>
    %204 = vector.extract_strided_slice %189 {offsets = [0, 384], sizes = [8, 128], strides = [1, 1]} : vector<8x512xf32> to vector<8x128xf32>
    %205 = arith.negf %204 : vector<8x128xf32>
    %206 = math.exp %205 : vector<8x128xf32>
    %cst_62 = arith.constant 1.000000e+00 : f32
    %207 = vector.broadcast %cst_62 : f32 to vector<8x128xf32>
    %208 = arith.addf %207, %206 : vector<8x128xf32>
    %209 = arith.divf %207, %208 : vector<8x128xf32>
    %210 = arith.mulf %201, %178 : vector<8x128xf32>
    %211 = arith.mulf %195, %203 : vector<8x128xf32>
    %212 = arith.addf %210, %211 : vector<8x128xf32>
    %213 = math.tanh %212 : vector<8x128xf32>
    %214 = arith.mulf %209, %213 : vector<8x128xf32>
    %215 = arith.index_cast %c5_i32 : i32 to index
    %c0_63 = arith.constant 0 : index
    %c0_64 = arith.constant 0 : index
    %216 = vector.load %arg8[%215, %c0_63, %c0_64] : memref<8x8x128xf32, #tpu.memory_space<vmem>>, vector<1x8x128xf32>
    %217 = vector.shape_cast %216 : vector<1x8x128xf32> to vector<8x128xf32>
    %218 = vector.shape_cast %214 : vector<8x128xf32> to vector<1x8x128xf32>
    tpu.vector_store %arg8[%215, %c0_63, %c0_64], %218 {strides = array<i32>} : memref<8x8x128xf32, #tpu.memory_space<vmem>>, vector<1x8x128xf32>,
    %c6_i32 = arith.constant 6 : i32
    %219 = arith.index_cast %c6_i32 : i32 to index
    %c0_65 = arith.constant 0 : index
    %c0_66 = arith.constant 0 : index
    %220 = vector.load %arg11[%219, %c0_65, %c0_66] : memref<8x8x512xf32, #tpu.memory_space<vmem>>, vector<1x8x512xf32>
    %221 = vector.shape_cast %220 : vector<1x8x512xf32> to vector<8x512xf32>
    %cst_67 = arith.constant dense<0.000000e+00> : vector<8x512xf32>
    %222 = tpu.matmul %214, %12, %cst_67 {dimension_numbers = #tpu.dot_dimension_numbers<[1], [0], [0], [1], [0, 0, 1, 1], [], []>} : vector<8x128xf32>, vector<128x512xf32>, vector<8x512xf32> -> vector<8x512xf32>
    %223 = arith.addf %221, %222 : vector<8x512xf32>
    %224 = vector.extract_strided_slice %223 {offsets = [0, 0], sizes = [8, 128], strides = [1, 1]} : vector<8x512xf32> to vector<8x128xf32>
    %225 = arith.negf %224 : vector<8x128xf32>
    %226 = math.exp %225 : vector<8x128xf32>
    %cst_68 = arith.constant 1.000000e+00 : f32
    %227 = vector.broadcast %cst_68 : f32 to vector<8x128xf32>
    %228 = arith.addf %227, %226 : vector<8x128xf32>
    %229 = arith.divf %227, %228 : vector<8x128xf32>
    %230 = vector.extract_strided_slice %223 {offsets = [0, 128], sizes = [8, 128], strides = [1, 1]} : vector<8x512xf32> to vector<8x128xf32>
    %231 = arith.negf %230 : vector<8x128xf32>
    %232 = math.exp %231 : vector<8x128xf32>
    %cst_69 = arith.constant 1.000000e+00 : f32
    %233 = vector.broadcast %cst_69 : f32 to vector<8x128xf32>
    %234 = arith.addf %233, %232 : vector<8x128xf32>
    %235 = arith.divf %233, %234 : vector<8x128xf32>
    %236 = vector.extract_strided_slice %223 {offsets = [0, 256], sizes = [8, 128], strides = [1, 1]} : vector<8x512xf32> to vector<8x128xf32>
    %237 = math.tanh %236 : vector<8x128xf32>
    %238 = vector.extract_strided_slice %223 {offsets = [0, 384], sizes = [8, 128], strides = [1, 1]} : vector<8x512xf32> to vector<8x128xf32>
    %239 = arith.negf %238 : vector<8x128xf32>
    %240 = math.exp %239 : vector<8x128xf32>
    %cst_70 = arith.constant 1.000000e+00 : f32
    %241 = vector.broadcast %cst_70 : f32 to vector<8x128xf32>
    %242 = arith.addf %241, %240 : vector<8x128xf32>
    %243 = arith.divf %241, %242 : vector<8x128xf32>
    %244 = arith.mulf %235, %212 : vector<8x128xf32>
    %245 = arith.mulf %229, %237 : vector<8x128xf32>
    %246 = arith.addf %244, %245 : vector<8x128xf32>
    %247 = math.tanh %246 : vector<8x128xf32>
    %248 = arith.mulf %243, %247 : vector<8x128xf32>
    %249 = arith.index_cast %c6_i32 : i32 to index
    %c0_71 = arith.constant 0 : index
    %c0_72 = arith.constant 0 : index
    %250 = vector.load %arg8[%249, %c0_71, %c0_72] : memref<8x8x128xf32, #tpu.memory_space<vmem>>, vector<1x8x128xf32>
    %251 = vector.shape_cast %250 : vector<1x8x128xf32> to vector<8x128xf32>
    %252 = vector.shape_cast %248 : vector<8x128xf32> to vector<1x8x128xf32>
    tpu.vector_store %arg8[%249, %c0_71, %c0_72], %252 {strides = array<i32>} : memref<8x8x128xf32, #tpu.memory_space<vmem>>, vector<1x8x128xf32>,
    %c7_i32 = arith.constant 7 : i32
    %253 = arith.index_cast %c7_i32 : i32 to index
    %c0_73 = arith.constant 0 : index
    %c0_74 = arith.constant 0 : index
    %254 = vector.load %arg11[%253, %c0_73, %c0_74] : memref<8x8x512xf32, #tpu.memory_space<vmem>>, vector<1x8x512xf32>
    %255 = vector.shape_cast %254 : vector<1x8x512xf32> to vector<8x512xf32>
    %cst_75 = arith.constant dense<0.000000e+00> : vector<8x512xf32>
    %256 = tpu.matmul %248, %12, %cst_75 {dimension_numbers = #tpu.dot_dimension_numbers<[1], [0], [0], [1], [0, 0, 1, 1], [], []>} : vector<8x128xf32>, vector<128x512xf32>, vector<8x512xf32> -> vector<8x512xf32>
    %257 = arith.addf %255, %256 : vector<8x512xf32>
    %258 = vector.extract_strided_slice %257 {offsets = [0, 0], sizes = [8, 128], strides = [1, 1]} : vector<8x512xf32> to vector<8x128xf32>
    %259 = arith.negf %258 : vector<8x128xf32>
    %260 = math.exp %259 : vector<8x128xf32>
    %cst_76 = arith.constant 1.000000e+00 : f32
    %261 = vector.broadcast %cst_76 : f32 to vector<8x128xf32>
    %262 = arith.addf %261, %260 : vector<8x128xf32>
    %263 = arith.divf %261, %262 : vector<8x128xf32>
    %264 = vector.extract_strided_slice %257 {offsets = [0, 128], sizes = [8, 128], strides = [1, 1]} : vector<8x512xf32> to vector<8x128xf32>
    %265 = arith.negf %264 : vector<8x128xf32>
    %266 = math.exp %265 : vector<8x128xf32>
    %cst_77 = arith.constant 1.000000e+00 : f32
    %267 = vector.broadcast %cst_77 : f32 to vector<8x128xf32>
    %268 = arith.addf %267, %266 : vector<8x128xf32>
    %269 = arith.divf %267, %268 : vector<8x128xf32>
    %270 = vector.extract_strided_slice %257 {offsets = [0, 256], sizes = [8, 128], strides = [1, 1]} : vector<8x512xf32> to vector<8x128xf32>
    %271 = math.tanh %270 : vector<8x128xf32>
    %272 = vector.extract_strided_slice %257 {offsets = [0, 384], sizes = [8, 128], strides = [1, 1]} : vector<8x512xf32> to vector<8x128xf32>
    %273 = arith.negf %272 : vector<8x128xf32>
    %274 = math.exp %273 : vector<8x128xf32>
    %cst_78 = arith.constant 1.000000e+00 : f32
    %275 = vector.broadcast %cst_78 : f32 to vector<8x128xf32>
    %276 = arith.addf %275, %274 : vector<8x128xf32>
    %277 = arith.divf %275, %276 : vector<8x128xf32>
    %278 = arith.mulf %269, %246 : vector<8x128xf32>
    %279 = arith.mulf %263, %271 : vector<8x128xf32>
    %280 = arith.addf %278, %279 : vector<8x128xf32>
    %281 = math.tanh %280 : vector<8x128xf32>
    %282 = arith.mulf %277, %281 : vector<8x128xf32>
    %283 = arith.index_cast %c7_i32 : i32 to index
    %c0_79 = arith.constant 0 : index
    %c0_80 = arith.constant 0 : index
    %284 = vector.load %arg8[%283, %c0_79, %c0_80] : memref<8x8x128xf32, #tpu.memory_space<vmem>>, vector<1x8x128xf32>
    %285 = vector.shape_cast %284 : vector<1x8x128xf32> to vector<8x128xf32>
    %286 = vector.shape_cast %282 : vector<8x128xf32> to vector<1x8x128xf32>
    tpu.vector_store %arg8[%283, %c0_79, %c0_80], %286 {strides = array<i32>} : memref<8x8x128xf32, #tpu.memory_space<vmem>>, vector<1x8x128xf32>,
    %c8_i32 = arith.constant 8 : i32
    %c0_81 = arith.constant 0 : index
    %c0_82 = arith.constant 0 : index
    %287 = vector.load %arg12[%c0_81, %c0_82] : memref<8x128xf32, #tpu.memory_space<vmem>>, vector<8x128xf32>
    tpu.vector_store %arg12[%c0_81, %c0_82], %282 {strides = array<i32>} : memref<8x128xf32, #tpu.memory_space<vmem>>, vector<8x128xf32>,
    %c0_83 = arith.constant 0 : index
    %c0_84 = arith.constant 0 : index
    %288 = vector.load %arg13[%c0_83, %c0_84] : memref<8x128xf32, #tpu.memory_space<vmem>>, vector<8x128xf32>
    tpu.vector_store %arg13[%c0_83, %c0_84], %280 {strides = array<i32>} : memref<8x128xf32, #tpu.memory_space<vmem>>, vector<8x128xf32>,
    %c0_i32_85 = arith.constant 0 : i32
    %289 = arith.cmpi eq, %arg1, %c0_i32_85 : i32
    %290 = arith.extui %289 : i1 to i32
    %c0_i32_86 = arith.constant 0 : i32
    %291 = arith.cmpi ne, %290, %c0_i32_86 : i32
    scf.if %291 {
      %c0_87 = arith.constant 0 : index
      %c0_88 = arith.constant 0 : index
      %292 = vector.load %arg9[%c0_87, %c0_88] : memref<8x128xf32, #tpu.memory_space<vmem>>, vector<8x128xf32>
      tpu.vector_store %arg9[%c0_87, %c0_88], %282 {strides = array<i32>} : memref<8x128xf32, #tpu.memory_space<vmem>>, vector<8x128xf32>,
      %c0_89 = arith.constant 0 : index
      %c0_90 = arith.constant 0 : index
      %293 = vector.load %arg10[%c0_89, %c0_90] : memref<8x128xf32, #tpu.memory_space<vmem>>, vector<8x128xf32>
      tpu.vector_store %arg10[%c0_89, %c0_90], %280 {strides = array<i32>} : memref<8x128xf32, #tpu.memory_space<vmem>>, vector<8x128xf32>,
    } else {
    }
    return
  }
  func.func @transform_0(%arg0: i32, %arg1: i32) -> (i32, i32, i32) {
    %c0_i32 = arith.constant 0 : i32
    %c0_i32_0 = arith.constant 0 : i32
    return %arg1, %arg0, %c0_i32 : i32, i32, i32
  }
  func.func @transform_1(%arg0: i32, %arg1: i32) -> (i32, i32) {
    %c0_i32 = arith.constant 0 : i32
    %c0_i32_0 = arith.constant 0 : i32
    %c0_i32_1 = arith.constant 0 : i32
    return %c0_i32, %c0_i32_0 : i32, i32
  }
  func.func @transform_2(%arg0: i32, %arg1: i32) -> (i32, i32) {
    %c0_i32 = arith.constant 0 : i32
    %c0_i32_0 = arith.constant 0 : i32
    %c0_i32_1 = arith.constant 0 : i32
    return %c0_i32, %c0_i32_0 : i32, i32
  }
  func.func @transform_3(%arg0: i32, %arg1: i32) -> (i32, i32) {
    %c0_i32 = arith.constant 0 : i32
    %c0_i32_0 = arith.constant 0 : i32
    %c0_i32_1 = arith.constant 0 : i32
    return %c0_i32, %c0_i32_0 : i32, i32
  }
  func.func @transform_4(%arg0: i32, %arg1: i32) -> (i32, i32) {
    %c0_i32 = arith.constant 0 : i32
    %c0_i32_0 = arith.constant 0 : i32
    return %arg0, %c0_i32 : i32, i32
  }
  func.func @transform_5(%arg0: i32, %arg1: i32) -> (i32, i32) {
    %c0_i32 = arith.constant 0 : i32
    %c0_i32_0 = arith.constant 0 : i32
    return %arg0, %c0_i32 : i32, i32
  }
  func.func @transform_6(%arg0: i32, %arg1: i32) -> (i32, i32, i32) {
    %c0_i32 = arith.constant 0 : i32
    %c0_i32_0 = arith.constant 0 : i32
    return %arg1, %arg0, %c0_i32 : i32, i32, i32
  }
  func.func @transform_7(%arg0: i32, %arg1: i32) -> (i32, i32) {
    %c0_i32 = arith.constant 0 : i32
    %c0_i32_0 = arith.constant 0 : i32
    return %arg0, %c0_i32 : i32, i32
  }
  func.func @transform_8(%arg0: i32, %arg1: i32) -> (i32, i32) {
    %c0_i32 = arith.constant 0 : i32
    %c0_i32_0 = arith.constant 0 : i32
    return %arg0, %c0_i32 : i32, i32
  }
}

</mosaic_0001>

<llo_original>
// kernel: tpu_custom_call.1
$region0: #{tpu_custom_call.1}
  #allocation0 [shape = 'u32[]', space=smem, size = 0x4, offset = 0x4, fixed_abs, tag = 'smem constant byte address 0x4 - core index']
  #allocation1 [shape = 'u32[144,128]{1,0:T(1,128)}', space=vmem, size = 0x12000, scoped, tag = 'internal scratch']
  #allocation2 [shape = 'f32[8,8,512]{2,1,0:T(8,128)}', space=vmem, size = 0x20000, scoped, tag = 'scratch operand']
  #allocation3 [shape = 'f32[8,128]{1,0:T(8,128)}', space=vmem, size = 0x1000, scoped, tag = 'scratch operand']
  #allocation4 [shape = 'f32[8,128]{1,0:T(8,128)}', space=vmem, size = 0x1000, scoped, tag = 'scratch operand']
  %s0 = inlined_call_operand.hbm [shape: f32[8,8,16], index: 0, kind: input, shape index: {}]
  %s1 = inlined_call_operand.hbm [shape: f32[16,512], index: 1, kind: input, shape index: {}]
  %s2 = inlined_call_operand.hbm [shape: f32[128,512], index: 2, kind: input, shape index: {}]
  %s3 = inlined_call_operand.hbm [shape: f32[1,512], index: 3, kind: input, shape index: {}]
  %s4 = inlined_call_operand.vmem [shape: f32[8,128], index: 4, kind: input, shape index: {}]
  %s5 = inlined_call_operand.vmem [shape: f32[8,128], index: 5, kind: input, shape index: {}]
  %s6 = inlined_call_operand.hbm [shape: f32[8,8,128], index: 6, kind: output, shape index: {0}]
  %s7 = inlined_call_operand.hbm [shape: f32[8,128], index: 7, kind: output, shape index: {1}]
  %s8 = inlined_call_operand.hbm [shape: f32[8,128], index: 8, kind: output, shape index: {2}]
  %9 = xla_tuple %s6, %s7, %s8
  %s10 = sld [smem:[#allocation0]]
  $region74: #{tpu_custom_call.1} parent=0
    _
  %s12 = ssub.s32 1, %s10
  %s13 = scalar_select 0, %s12, %s10
  $region1: #{tpu_custom_call.1} parent=0
    #allocation5 [shape = 'u8[32768]{0}', space=vmem, size = 0x8000, scoped, tag = 'input window, operand 0, single buffered']
    #allocation6 [shape = 's32[1]{0}', space=sflag, size = 0x4, scoped, tag = 'scoped memory for tpu_custom_call.1']
    #allocation7 [shape = 's32[1]{0}', space=sflag, size = 0x4, scoped, tag = 'scoped memory for tpu_custom_call.1']
    #allocation8 [shape = 'u8[32768]{0}', space=vmem, size = 0x8000, scoped, tag = 'input window, operand 1, single buffered']
    #allocation9 [shape = 's32[1]{0}', space=sflag, size = 0x4, scoped, tag = 'scoped memory for tpu_custom_call.1']
    #allocation10 [shape = 'u8[262144]{0}', space=vmem, size = 0x40000, scoped, tag = 'input window, operand 2, single buffered']
    #allocation11 [shape = 'u8[2048]{0}', space=vmem, size = 0x800, scoped, tag = 'input window, operand 3, single buffered']
    #allocation12 [shape = 's32[1]{0}', space=sflag, size = 0x4, scoped, tag = 'scoped memory for tpu_custom_call.1']
    #allocation13 [shape = 'u8[32768]{0}', space=vmem, size = 0x8000, scoped, tag = 'output window, operand 0, single buffered']
    #allocation14 [shape = 'u8[4096]{0}', space=vmem, size = 0x1000, scoped, tag = 'output window, operand 1, single buffered']
    #allocation15 [shape = 's32[1]{0}', space=sflag, size = 0x4, scoped, tag = 'scoped memory for tpu_custom_call.1']
    #allocation16 [shape = 'u8[4096]{0}', space=vmem, size = 0x1000, scoped, tag = 'output window, operand 2, single buffered']
    %14 = vsyncpa [#allocation6], 0
    %15 = vsyncpa [#allocation9], 0
    %16 = vsyncpa [#allocation12], 0
    %17 = vsyncpa [#allocation7], 0
    %18 = vsyncpa [#allocation15], 0
    // Predicated region
    $region2: #{tpu_custom_call.1} parent=1 // pred_check
      _
    $region3: #{tpu_custom_call.1} parent=1 // pred_check_branch
      %20 = sbr.rel (0) target = $region5
    $region4: #{tpu_custom_call.1} parent=1 // pred_region
      %s22 = ssub.s32 1024, 1024
      %23 = vsyncadd [#allocation6], %s22
      %s24 = sshll.u32 [#allocation5], 4
      %s25 = int_to_ptr.vmem [resolvable:$true] %s24
      %30 = dma.hbm_to_vmem [thread:$0]  %s0, 1024, %s25, [#allocation6], 128, 128, 8
    $region5: #{tpu_custom_call.1} parent=1 // pred_fallthru
      _
    // Predicated region
    $region6: #{tpu_custom_call.1} parent=1 // pred_check
      _
    $region7: #{tpu_custom_call.1} parent=1 // pred_check_branch
      %32 = sbr.rel (0) target = $region9
    $region8: #{tpu_custom_call.1} parent=1 // pred_region
      %s34 = ssub.s32 1024, 1024
      %35 = vsyncadd [#allocation9], %s34
      %s36 = sshll.u32 [#allocation8], 4
      %s37 = int_to_ptr.vmem [resolvable:$true] %s36
      %42 = dma.hbm_to_vmem [thread:$0]  %s1, 1024, %s37, [#allocation9], 512, 512, 32
    $region9: #{tpu_custom_call.1} parent=1 // pred_fallthru
      _
    // Predicated region
    $region10: #{tpu_custom_call.1} parent=1 // pred_check
      _
    $region11: #{tpu_custom_call.1} parent=1 // pred_check_branch
      %44 = sbr.rel (0) target = $region13
    $region12: #{tpu_custom_call.1} parent=1 // pred_region
      %s46 = ssub.s32 8192, 8192
      %47 = vsyncadd [#allocation9], %s46
      %s48 = sshll.u32 [#allocation10], 4
      %s49 = int_to_ptr.vmem [resolvable:$true] %s48
      %54 = dma.hbm_to_vmem [thread:$0]  %s2, 8192, %s49, [#allocation9], 512, 512, 32
    $region13: #{tpu_custom_call.1} parent=1 // pred_fallthru
      _
    // Predicated region
    $region14: #{tpu_custom_call.1} parent=1 // pred_check
      _
    $region15: #{tpu_custom_call.1} parent=1 // pred_check_branch
      %56 = sbr.rel (0) target = $region17
    $region16: #{tpu_custom_call.1} parent=1 // pred_region
      %s58 = ssub.s32 64, 64
      %59 = vsyncadd [#allocation12], %s58
      %s61 = sshll.u32 [#allocation11], 4
      %s62 = int_to_ptr.vmem [resolvable:$true] %s61
      %64 = dma.hbm_to_vmem [thread:$0]  %s3, 64, %s62, [#allocation12]
    $region17: #{tpu_custom_call.1} parent=1 // pred_fallthru
      _
    // Predicated region
    $region18: #{tpu_custom_call.1} parent=1 // pred_check
      _
    $region19: #{tpu_custom_call.1} parent=1 // pred_check_branch
      %66 = sbr.rel (0) target = $region21
    $region20: #{tpu_custom_call.1} parent=1 // pred_region
      _
    $region21: #{tpu_custom_call.1} parent=1 // pred_fallthru
      _
    // Predicated region
    $region22: #{tpu_custom_call.1} parent=1 // pred_check
      _
    $region23: #{tpu_custom_call.1} parent=1 // pred_check_branch
      %68 = sbr.rel (0) target = $region25
    $region24: #{tpu_custom_call.1} parent=1 // pred_region
      _
    $region25: #{tpu_custom_call.1} parent=1 // pred_fallthru
      _
    // Predicated region
    $region26: #{tpu_custom_call.1} parent=1 // pred_check
      _
    $region27: #{tpu_custom_call.1} parent=1 // pred_check_branch
      %70 = sbr.rel (0) target = $region29
    $region28: #{tpu_custom_call.1} parent=1 // pred_region
      %71 = dma.done [#allocation6], 1024
    $region29: #{tpu_custom_call.1} parent=1 // pred_fallthru
      _
    // Predicated region
    $region30: #{tpu_custom_call.1} parent=1 // pred_check
      _
    $region31: #{tpu_custom_call.1} parent=1 // pred_check_branch
      %73 = sbr.rel (0) target = $region33
    $region32: #{tpu_custom_call.1} parent=1 // pred_region
      %74 = dma.done [#allocation9], 1024
    $region33: #{tpu_custom_call.1} parent=1 // pred_fallthru
      _
    // Predicated region
    $region34: #{tpu_custom_call.1} parent=1 // pred_check
      _
    $region35: #{tpu_custom_call.1} parent=1 // pred_check_branch
      %76 = sbr.rel (0) target = $region37
    $region36: #{tpu_custom_call.1} parent=1 // pred_region
      %77 = dma.done [#allocation9], 8192
    $region37: #{tpu_custom_call.1} parent=1 // pred_fallthru
      _
    // Predicated region
    $region38: #{tpu_custom_call.1} parent=1 // pred_check
      _
    $region39: #{tpu_custom_call.1} parent=1 // pred_check_branch
      %79 = sbr.rel (0) target = $region41
    $region40: #{tpu_custom_call.1} parent=1 // pred_region
      %80 = dma.done [#allocation12], 64
    $region41: #{tpu_custom_call.1} parent=1 // pred_fallthru
      _
    %p81 = scmp.eq.s32.totalorder 0, 0
    // Predicated region
    $region42: #{tpu_custom_call.1} parent=1 // pred_check
      %p82 = pneg %p81
    $region43: #{tpu_custom_call.1} parent=1 // pred_check_branch
      %84 = sbr.rel (%p82) target = $region45
    $region44: #{tpu_custom_call.1} parent=1 // pred_region
      %v85 = vld [vmem:[%s4] sm:$0xff]
      %86 = vst [vmem:[#allocation3] sm:$0xff] %v85
      %v87 = vld [vmem:[%s5] sm:$0xff]
      %88 = vst [vmem:[#allocation4] sm:$0xff] %v87
    $region45: #{tpu_custom_call.1} parent=1 // pred_fallthru
      _
    %v89 = vld [vmem:[#allocation5] sm:$0xff]
    %v90 = vld [vmem:[#allocation5 + $0x8] sm:$0xff]
    %v91 = vld [vmem:[#allocation5 + $0x10] sm:$0xff]
    %v92 = vld [vmem:[#allocation5 + $0x18] sm:$0xff]
    %v93 = vld [vmem:[#allocation5 + $0x20] sm:$0xff]
    %v94 = vld [vmem:[#allocation5 + $0x28] sm:$0xff]
    %v95 = vld [vmem:[#allocation5 + $0x30] sm:$0xff]
    %v96 = vld [vmem:[#allocation5 + $0x38] sm:$0xff]
    %v97 = vld [vmem:[#allocation8] sm:$0xff]
    %v98 = vld [vmem:[#allocation8 + $0x8] sm:$0xff]
    %v99 = vld [vmem:[#allocation8 + $0x10] sm:$0xff]
    %v100 = vld [vmem:[#allocation8 + $0x18] sm:$0xff]
    %v101 = vld [vmem:[#allocation8 + $0x20] sm:$0xff]
    %v102 = vld [vmem:[#allocation8 + $0x28] sm:$0xff]
    %v103 = vld [vmem:[#allocation8 + $0x30] sm:$0xff]
    %v104 = vld [vmem:[#allocation8 + $0x38] sm:$0xff]
    %v105 = vld [vmem:[#allocation11] sm:$0xf]
    %v107 = vlaneseq
    %v108 = vshrl.u32 %v107, 7
    %v109 = vsub.s32 0, %v108
    %v110 = vrot.slane %v105, %v109
    %v111 = vlaneseq
    %v112 = vshrl.u32 %v111, 7
    %v113 = vsub.s32 1, %v112
    %v114 = vrot.slane %v105, %v113
    %v115 = vlaneseq
    %v116 = vshrl.u32 %v115, 7
    %v117 = vsub.s32 2, %v116
    %v118 = vrot.slane %v105, %v117
    %v119 = vlaneseq
    %v120 = vshrl.u32 %v119, 7
    %v121 = vsub.s32 3, %v120
    %v122 = vrot.slane %v105, %v121
    %vm127 = vcmask 130048
    %v129 = vsel %vm127, %v89, 0
    %v132 = vsel %vm127, %v90, 0
    %v135 = vsel %vm127, %v91, 0
    %v138 = vsel %vm127, %v92, 0
    %v141 = vsel %vm127, %v93, 0
    %v144 = vsel %vm127, %v94, 0
    %v147 = vsel %vm127, %v95, 0
    %v150 = vsel %vm127, %v96, 0
    %152 = vmatprep.subr.mxu0 %v98
    %153 = vmatpush1.msra.mxu0 %v97
    %154 = vmatprep.subr.mxu0 %v102
    %155 = vmatpush1.msra.mxu0 %v101
    %156 = vmatprep.subr.mxu0 0.0
    %157 = vmatpush1.msra.mxu0 0.0
    %158 = vmatprep.subr.mxu0 0.0
    %159 = vmatpush1.msra.mxu0 0.0
    %160 = vmatprep.subr.mxu0 0.0
    %161 = vmatpush1.msra.mxu0 0.0
    %162 = vmatprep.subr.mxu0 0.0
    %163 = vmatpush1.msra.mxu0 0.0
    %164 = vmatprep.subr.mxu0 0.0
    %165 = vmatpush1.msra.mxu0 0.0
    %166 = vmatprep.subr.mxu0 0.0
    %167 = vmatpush1.msra.mxu0 0.0
    %168 = vmatprep.subr.mxu0 0.0
    %169 = vmatpush1.msra.mxu0 0.0
    %170 = vmatprep.subr.mxu0 0.0
    %171 = vmatpush1.msra.mxu0 0.0
    %172 = vmatprep.subr.mxu0 0.0
    %173 = vmatpush1.msra.mxu0 0.0
    %174 = vmatprep.subr.mxu0 0.0
    %175 = vmatpush1.msra.mxu0 0.0
    %176 = vmatprep.subr.mxu0 0.0
    %177 = vmatpush1.msra.mxu0 0.0
    %178 = vmatprep.subr.mxu0 0.0
    %179 = vmatpush1.msra.mxu0 0.0
    %180 = vmatprep.subr.mxu0 0.0
    %181 = vmatpush1.msra.mxu0 0.0
    %182 = vmatprep.subr.mxu0 0.0
    %183 = vmatpush1.msra.mxu0 0.0
    %184 = vmatprep.subr.mxu0 0.0
    %185 = vmatpush1.msra.mxu0 0.0
    %186 = vmatprep.subr.mxu0 0.0
    %187 = vmatpush1.msra.mxu0 0.0
    %188 = vmatprep.subr.mxu0 0.0
    %189 = vmatpush1.msra.mxu0 0.0
    %190 = vmatprep.subr.mxu0 0.0
    %191 = vmatpush1.msra.mxu0 0.0
    %192 = vmatprep.subr.mxu0 0.0
    %193 = vmatpush1.msra.mxu0 0.0
    %194 = vmatprep.subr.mxu0 0.0
    %195 = vmatpush1.msra.mxu0 0.0
    %196 = vmatprep.subr.mxu0 0.0
    %197 = vmatpush1.msra.mxu0 0.0
    %198 = vmatprep.subr.mxu0 0.0
    %199 = vmatpush1.msra.mxu0 0.0
    %200 = vmatprep.subr.mxu0 0.0
    %201 = vmatpush1.msra.mxu0 0.0
    %202 = vmatprep.subr.mxu0 0.0
    %203 = vmatpush1.msra.mxu0 0.0
    %204 = vmatprep.subr.mxu0 0.0
    %205 = vmatpush1.msra.mxu0 0.0
    %206 = vmatprep.subr.mxu0 0.0
    %207 = vmatpush1.msra.mxu0 0.0
    %208 = vmatprep.subr.mxu0 0.0
    %209 = vmatpush1.msra.mxu0 0.0
    %210 = vmatprep.subr.mxu0 0.0
    %211 = vmatpush1.msra.mxu0 0.0
    %212 = vmatprep.subr.mxu0 0.0
    %213 = vmatpush1.msra.mxu0 0.0
    %214 = vmatprep.subr.mxu0 0.0
    %215 = vmatpush1.msra.mxu0 0.0
    %216 = vmatprep.mubr.f32.mxu0 0.0
    %217 = vmatmul.mubr.f32.gmra.mrb[0].mxu0 %v129
    %v218 = vpop.f32.mrb[0].mxu0
    %v219 = vadd.f32 %v110, %v218
    %v220 = vpop.f32.mrb[0].mxu0
    %v221 = vadd.f32 %v114, %v220
    %222 = vmatprep.mubr.f32.mxu0 0.0
    %223 = vmatmul.mubr.f32.gmra.mrb[0].mxu0 %v132
    %v224 = vpop.f32.mrb[0].mxu0
    %v225 = vadd.f32 %v110, %v224
    %v226 = vpop.f32.mrb[0].mxu0
    %v227 = vadd.f32 %v114, %v226
    %228 = vmatprep.mubr.f32.mxu0 0.0
    %229 = vmatmul.mubr.f32.gmra.mrb[0].mxu0 %v135
    %v230 = vpop.f32.mrb[0].mxu0
    %v231 = vadd.f32 %v110, %v230
    %v232 = vpop.f32.mrb[0].mxu0
    %v233 = vadd.f32 %v114, %v232
    %234 = vmatprep.mubr.f32.mxu0 0.0
    %235 = vmatmul.mubr.f32.gmra.mrb[0].mxu0 %v138
    %v236 = vpop.f32.mrb[0].mxu0
    %v237 = vadd.f32 %v110, %v236
    %v238 = vpop.f32.mrb[0].mxu0
    %v239 = vadd.f32 %v114, %v238
    %240 = vmatprep.mubr.f32.mxu0 0.0
    %241 = vmatmul.mubr.f32.gmra.mrb[0].mxu0 %v141
    %v242 = vpop.f32.mrb[0].mxu0
    %v243 = vadd.f32 %v110, %v242
    %v244 = vpop.f32.mrb[0].mxu0
    %v245 = vadd.f32 %v114, %v244
    %246 = vmatprep.mubr.f32.mxu0 0.0
    %247 = vmatmul.mubr.f32.gmra.mrb[0].mxu0 %v144
    %v248 = vpop.f32.mrb[0].mxu0
    %v249 = vadd.f32 %v110, %v248
    %v250 = vpop.f32.mrb[0].mxu0
    %v251 = vadd.f32 %v114, %v250
    %252 = vmatprep.mubr.f32.mxu0 0.0
    %253 = vmatmul.mubr.f32.gmra.mrb[0].mxu0 %v147
    %v254 = vpop.f32.mrb[0].mxu0
    %v255 = vadd.f32 %v110, %v254
    %v256 = vpop.f32.mrb[0].mxu0
    %v257 = vadd.f32 %v114, %v256
    %258 = vmatprep.mubr.f32.mxu0 0.0
    %259 = vmatmul.mubr.f32.gmra.mrb[0].mxu0 %v150
    %v260 = vpop.f32.mrb[0].mxu0
    %v261 = vadd.f32 %v110, %v260
    %v262 = vpop.f32.mrb[0].mxu0
    %v263 = vadd.f32 %v114, %v262
    %264 = vdwg.mxu0
    %265 = vmatprep.subr.mxu0 %v100
    %266 = vmatpush1.msra.mxu0 %v99
    %267 = vmatprep.subr.mxu0 %v104
    %268 = vmatpush1.msra.mxu0 %v103
    %269 = vmatprep.subr.mxu0 0.0
    %270 = vmatpush1.msra.mxu0 0.0
    %271 = vmatprep.subr.mxu0 0.0
    %272 = vmatpush1.msra.mxu0 0.0
    %273 = vmatprep.subr.mxu0 0.0
    %274 = vmatpush1.msra.mxu0 0.0
    %275 = vmatprep.subr.mxu0 0.0
    %276 = vmatpush1.msra.mxu0 0.0
    %277 = vmatprep.subr.mxu0 0.0
    %278 = vmatpush1.msra.mxu0 0.0
    %279 = vmatprep.subr.mxu0 0.0
    %280 = vmatpush1.msra.mxu0 0.0
    %281 = vmatprep.subr.mxu0 0.0
    %282 = vmatpush1.msra.mxu0 0.0
    %283 = vmatprep.subr.mxu0 0.0
    %284 = vmatpush1.msra.mxu0 0.0
    %285 = vmatprep.subr.mxu0 0.0
    %286 = vmatpush1.msra.mxu0 0.0
    %287 = vmatprep.subr.mxu0 0.0
    %288 = vmatpush1.msra.mxu0 0.0
    %289 = vmatprep.subr.mxu0 0.0
    %290 = vmatpush1.msra.mxu0 0.0
    %291 = vmatprep.subr.mxu0 0.0
    %292 = vmatpush1.msra.mxu0 0.0
    %293 = vmatprep.subr.mxu0 0.0
    %294 = vmatpush1.msra.mxu0 0.0
    %295 = vmatprep.subr.mxu0 0.0
    %296 = vmatpush1.msra.mxu0 0.0
    %297 = vmatprep.subr.mxu0 0.0
    %298 = vmatpush1.msra.mxu0 0.0
    %299 = vmatprep.subr.mxu0 0.0
    %300 = vmatpush1.msra.mxu0 0.0
    %301 = vmatprep.subr.mxu0 0.0
    %302 = vmatpush1.msra.mxu0 0.0
    %303 = vmatprep.subr.mxu0 0.0
    %304 = vmatpush1.msra.mxu0 0.0
    %305 = vmatprep.subr.mxu0 0.0
    %306 = vmatpush1.msra.mxu0 0.0
    %307 = vmatprep.subr.mxu0 0.0
    %308 = vmatpush1.msra.mxu0 0.0
    %309 = vmatprep.subr.mxu0 0.0
    %310 = vmatpush1.msra.mxu0 0.0
    %311 = vmatprep.subr.mxu0 0.0
    %312 = vmatpush1.msra.mxu0 0.0
    %313 = vmatprep.subr.mxu0 0.0
    %314 = vmatpush1.msra.mxu0 0.0
    %315 = vmatprep.subr.mxu0 0.0
    %316 = vmatpush1.msra.mxu0 0.0
    %317 = vmatprep.subr.mxu0 0.0
    %318 = vmatpush1.msra.mxu0 0.0
    %319 = vmatprep.subr.mxu0 0.0
    %320 = vmatpush1.msra.mxu0 0.0
    %321 = vmatprep.subr.mxu0 0.0
    %322 = vmatpush1.msra.mxu0 0.0
    %323 = vmatprep.subr.mxu0 0.0
    %324 = vmatpush1.msra.mxu0 0.0
    %325 = vmatprep.subr.mxu0 0.0
    %326 = vmatpush1.msra.mxu0 0.0
    %327 = vmatprep.subr.mxu0 0.0
    %328 = vmatpush1.msra.mxu0 0.0
    %329 = vmatprep.mubr.f32.mxu0 0.0
    %330 = vmatmul.mubr.f32.gmra.mrb[0].mxu0 %v129
    %v331 = vpop.f32.mrb[0].mxu0
    %v332 = vadd.f32 %v118, %v331
    %v333 = vpop.f32.mrb[0].mxu0
    %v334 = vadd.f32 %v122, %v333
    %335 = vmatprep.mubr.f32.mxu0 0.0
    %336 = vmatmul.mubr.f32.gmra.mrb[0].mxu0 %v132
    %v337 = vpop.f32.mrb[0].mxu0
    %v338 = vadd.f32 %v118, %v337
    %v339 = vpop.f32.mrb[0].mxu0
    %v340 = vadd.f32 %v122, %v339
    %341 = vmatprep.mubr.f32.mxu0 0.0
    %342 = vmatmul.mubr.f32.gmra.mrb[0].mxu0 %v135
    %v343 = vpop.f32.mrb[0].mxu0
    %v344 = vadd.f32 %v118, %v343
    %v345 = vpop.f32.mrb[0].mxu0
    %v346 = vadd.f32 %v122, %v345
    %347 = vmatprep.mubr.f32.mxu0 0.0
    %348 = vmatmul.mubr.f32.gmra.mrb[0].mxu0 %v138
    %v349 = vpop.f32.mrb[0].mxu0
    %v350 = vadd.f32 %v118, %v349
    %v351 = vpop.f32.mrb[0].mxu0
    %v352 = vadd.f32 %v122, %v351
    %353 = vmatprep.mubr.f32.mxu0 0.0
    %354 = vmatmul.mubr.f32.gmra.mrb[0].mxu0 %v141
    %v355 = vpop.f32.mrb[0].mxu0
    %v356 = vadd.f32 %v118, %v355
    %v357 = vpop.f32.mrb[0].mxu0
    %v358 = vadd.f32 %v122, %v357
    %359 = vmatprep.mubr.f32.mxu0 0.0
    %360 = vmatmul.mubr.f32.gmra.mrb[0].mxu0 %v144
    %v361 = vpop.f32.mrb[0].mxu0
    %v362 = vadd.f32 %v118, %v361
    %v363 = vpop.f32.mrb[0].mxu0
    %v364 = vadd.f32 %v122, %v363
    %365 = vmatprep.mubr.f32.mxu0 0.0
    %366 = vmatmul.mubr.f32.gmra.mrb[0].mxu0 %v147
    %v367 = vpop.f32.mrb[0].mxu0
    %v368 = vadd.f32 %v118, %v367
    %v369 = vpop.f32.mrb[0].mxu0
    %v370 = vadd.f32 %v122, %v369
    %371 = vmatprep.mubr.f32.mxu0 0.0
    %372 = vmatmul.mubr.f32.gmra.mrb[0].mxu0 %v150
    %v373 = vpop.f32.mrb[0].mxu0
    %v374 = vadd.f32 %v118, %v373
    %v375 = vpop.f32.mrb[0].mxu0
    %v376 = vadd.f32 %v122, %v375
    %377 = vdwg.mxu0
    %378 = vst [vmem:[#allocation2] sm:$0xff] %v219
    %379 = vst [vmem:[#allocation2 + $0x8] sm:$0xff] %v221
    %380 = vst [vmem:[#allocation2 + $0x10] sm:$0xff] %v332
    %381 = vst [vmem:[#allocation2 + $0x18] sm:$0xff] %v334
    %382 = vst [vmem:[#allocation2 + $0x20] sm:$0xff] %v225
    %383 = vst [vmem:[#allocation2 + $0x28] sm:$0xff] %v227
    %384 = vst [vmem:[#allocation2 + $0x30] sm:$0xff] %v338
    %385 = vst [vmem:[#allocation2 + $0x38] sm:$0xff] %v340
    %386 = vst [vmem:[#allocation2 + $0x40] sm:$0xff] %v231
    %387 = vst [vmem:[#allocation2 + $0x48] sm:$0xff] %v233
    %388 = vst [vmem:[#allocation2 + $0x50] sm:$0xff] %v344
    %389 = vst [vmem:[#allocation2 + $0x58] sm:$0xff] %v346
    %390 = vst [vmem:[#allocation2 + $0x60] sm:$0xff] %v237
    %391 = vst [vmem:[#allocation2 + $0x68] sm:$0xff] %v239
    %392 = vst [vmem:[#allocation2 + $0x70] sm:$0xff] %v350
    %393 = vst [vmem:[#allocation2 + $0x78] sm:$0xff] %v352
    %394 = vst [vmem:[#allocation2 + $0x80] sm:$0xff] %v243
    %395 = vst [vmem:[#allocation2 + $0x88] sm:$0xff] %v245
    %396 = vst [vmem:[#allocation2 + $0x90] sm:$0xff] %v356
    %397 = vst [vmem:[#allocation2 + $0x98] sm:$0xff] %v358
    %398 = vst [vmem:[#allocation2 + $0xa0] sm:$0xff] %v249
    %399 = vst [vmem:[#allocation2 + $0xa8] sm:$0xff] %v251
    %400 = vst [vmem:[#allocation2 + $0xb0] sm:$0xff] %v362
    %401 = vst [vmem:[#allocation2 + $0xb8] sm:$0xff] %v364
    %402 = vst [vmem:[#allocation2 + $0xc0] sm:$0xff] %v255
    %403 = vst [vmem:[#allocation2 + $0xc8] sm:$0xff] %v257
    %404 = vst [vmem:[#allocation2 + $0xd0] sm:$0xff] %v368
    %405 = vst [vmem:[#allocation2 + $0xd8] sm:$0xff] %v370
    %406 = vst [vmem:[#allocation2 + $0xe0] sm:$0xff] %v261
    %407 = vst [vmem:[#allocation2 + $0xe8] sm:$0xff] %v263
    %408 = vst [vmem:[#allocation2 + $0xf0] sm:$0xff] %v374
    %409 = vst [vmem:[#allocation2 + $0xf8] sm:$0xff] %v376
    %v410 = vld [vmem:[#allocation10] sm:$0xff]
    %v411 = vld [vmem:[#allocation10 + $0x8] sm:$0xff]
    %v412 = vld [vmem:[#allocation10 + $0x10] sm:$0xff]
    %v413 = vld [vmem:[#allocation10 + $0x18] sm:$0xff]
    %v414 = vld [vmem:[#allocation10 + $0x20] sm:$0xff]
    %v415 = vld [vmem:[#allocation10 + $0x28] sm:$0xff]
    %v416 = vld [vmem:[#allocation10 + $0x30] sm:$0xff]
    %v417 = vld [vmem:[#allocation10 + $0x38] sm:$0xff]
    %v418 = vld [vmem:[#allocation10 + $0x40] sm:$0xff]
    %v419 = vld [vmem:[#allocation10 + $0x48] sm:$0xff]
    %v420 = vld [vmem:[#allocation10 + $0x50] sm:$0xff]
    %v421 = vld [vmem:[#allocation10 + $0x58] sm:$0xff]
    %v422 = vld [vmem:[#allocation10 + $0x60] sm:$0xff]
    %v423 = vld [vmem:[#allocation10 + $0x68] sm:$0xff]
    %v424 = vld [vmem:[#allocation10 + $0x70] sm:$0xff]
    %v425 = vld [vmem:[#allocation10 + $0x78] sm:$0xff]
    %v426 = vld [vmem:[#allocation10 + $0x80] sm:$0xff]
    %v427 = vld [vmem:[#allocation10 + $0x88] sm:$0xff]
    %v428 = vld [vmem:[#allocation10 + $0x90] sm:$0xff]
    %v429 = vld [vmem:[#allocation10 + $0x98] sm:$0xff]
    %v430 = vld [vmem:[#allocation10 + $0xa0] sm:$0xff]
    %v431 = vld [vmem:[#allocation10 + $0xa8] sm:$0xff]
    %v432 = vld [vmem:[#allocation10 + $0xb0] sm:$0xff]
    %v433 = vld [vmem:[#allocation10 + $0xb8] sm:$0xff]
    %v434 = vld [vmem:[#allocation10 + $0xc0] sm:$0xff]
    %v435 = vld [vmem:[#allocation10 + $0xc8] sm:$0xff]
    %v436 = vld [vmem:[#allocation10 + $0xd0] sm:$0xff]
    %v437 = vld [vmem:[#allocation10 + $0xd8] sm:$0xff]
    %v438 = vld [vmem:[#allocation10 + $0xe0] sm:$0xff]
    %v439 = vld [vmem:[#allocation10 + $0xe8] sm:$0xff]
    %v440 = vld [vmem:[#allocation10 + $0xf0] sm:$0xff]
    %v441 = vld [vmem:[#allocation10 + $0xf8] sm:$0xff]
    %v442 = vld [vmem:[#allocation10 + $0x100] sm:$0xff]
    %v443 = vld [vmem:[#allocation10 + $0x108] sm:$0xff]
    %v444 = vld [vmem:[#allocation10 + $0x110] sm:$0xff]
    %v445 = vld [vmem:[#allocation10 + $0x118] sm:$0xff]
    %v446 = vld [vmem:[#allocation10 + $0x120] sm:$0xff]
    %v447 = vld [vmem:[#allocation10 + $0x128] sm:$0xff]
    %v448 = vld [vmem:[#allocation10 + $0x130] sm:$0xff]
    %v449 = vld [vmem:[#allocation10 + $0x138] sm:$0xff]
    %v450 = vld [vmem:[#allocation10 + $0x140] sm:$0xff]
    %v451 = vld [vmem:[#allocation10 + $0x148] sm:$0xff]
    %v452 = vld [vmem:[#allocation10 + $0x150] sm:$0xff]
    %v453 = vld [vmem:[#allocation10 + $0x158] sm:$0xff]
    %v454 = vld [vmem:[#allocation10 + $0x160] sm:$0xff]
    %v455 = vld [vmem:[#allocation10 + $0x168] sm:$0xff]
    %v456 = vld [vmem:[#allocation10 + $0x170] sm:$0xff]
    %v457 = vld [vmem:[#allocation10 + $0x178] sm:$0xff]
    %v458 = vld [vmem:[#allocation10 + $0x180] sm:$0xff]
    %v459 = vld [vmem:[#allocation10 + $0x188] sm:$0xff]
    %v460 = vld [vmem:[#allocation10 + $0x190] sm:$0xff]
    %v461 = vld [vmem:[#allocation10 + $0x198] sm:$0xff]
    %v462 = vld [vmem:[#allocation10 + $0x1a0] sm:$0xff]
    %v463 = vld [vmem:[#allocation10 + $0x1a8] sm:$0xff]
    %v464 = vld [vmem:[#allocation10 + $0x1b0] sm:$0xff]
    %v465 = vld [vmem:[#allocation10 + $0x1b8] sm:$0xff]
    %v466 = vld [vmem:[#allocation10 + $0x1c0] sm:$0xff]
    %v467 = vld [vmem:[#allocation10 + $0x1c8] sm:$0xff]
    %v468 = vld [vmem:[#allocation10 + $0x1d0] sm:$0xff]
    %v469 = vld [vmem:[#allocation10 + $0x1d8] sm:$0xff]
    %v470 = vld [vmem:[#allocation10 + $0x1e0] sm:$0xff]
    %v471 = vld [vmem:[#allocation10 + $0x1e8] sm:$0xff]
    %v472 = vld [vmem:[#allocation10 + $0x1f0] sm:$0xff]
    %v473 = vld [vmem:[#allocation10 + $0x1f8] sm:$0xff]
    %v474 = vld [vmem:[#allocation3] sm:$0xff]
    %v475 = vld [vmem:[#allocation4] sm:$0xff]
    %v476 = vld [vmem:[#allocation2] sm:$0xff]
    %v477 = vld [vmem:[#allocation2 + $0x8] sm:$0xff]
    %v478 = vld [vmem:[#allocation2 + $0x10] sm:$0xff]
    %v479 = vld [vmem:[#allocation2 + $0x18] sm:$0xff]
    %480 = vmatprep.subr.mxu0 %v411
    %481 = vmatpush1.msra.mxu0 %v410
    %482 = vmatprep.subr.mxu0 %v415
    %483 = vmatpush1.msra.mxu0 %v414
    %484 = vmatprep.subr.mxu0 %v419
    %485 = vmatpush1.msra.mxu0 %v418
    %486 = vmatprep.subr.mxu0 %v423
    %487 = vmatpush1.msra.mxu0 %v422
    %488 = vmatprep.subr.mxu0 %v427
    %489 = vmatpush1.msra.mxu0 %v426
    %490 = vmatprep.subr.mxu0 %v431
    %491 = vmatpush1.msra.mxu0 %v430
    %492 = vmatprep.subr.mxu0 %v435
    %493 = vmatpush1.msra.mxu0 %v434
    %494 = vmatprep.subr.mxu0 %v439
    %495 = vmatpush1.msra.mxu0 %v438
    %496 = vmatprep.subr.mxu0 %v443
    %497 = vmatpush1.msra.mxu0 %v442
    %498 = vmatprep.subr.mxu0 %v447
    %499 = vmatpush1.msra.mxu0 %v446
    %500 = vmatprep.subr.mxu0 %v451
    %501 = vmatpush1.msra.mxu0 %v450
    %502 = vmatprep.subr.mxu0 %v455
    %503 = vmatpush1.msra.mxu0 %v454
    %504 = vmatprep.subr.mxu0 %v459
    %505 = vmatpush1.msra.mxu0 %v458
    %506 = vmatprep.subr.mxu0 %v463
    %507 = vmatpush1.msra.mxu0 %v462
    %508 = vmatprep.subr.mxu0 %v467
    %509 = vmatpush1.msra.mxu0 %v466
    %510 = vmatprep.subr.mxu0 %v471
    %511 = vmatpush1.msra.mxu0 %v470
    %512 = vmatprep.subr.mxu0 0.0
    %513 = vmatpush1.msra.mxu0 0.0
    %514 = vmatprep.subr.mxu0 0.0
    %515 = vmatpush1.msra.mxu0 0.0
    %516 = vmatprep.subr.mxu0 0.0
    %517 = vmatpush1.msra.mxu0 0.0
    %518 = vmatprep.subr.mxu0 0.0
    %519 = vmatpush1.msra.mxu0 0.0
    %520 = vmatprep.subr.mxu0 0.0
    %521 = vmatpush1.msra.mxu0 0.0
    %522 = vmatprep.subr.mxu0 0.0
    %523 = vmatpush1.msra.mxu0 0.0
    %524 = vmatprep.subr.mxu0 0.0
    %525 = vmatpush1.msra.mxu0 0.0
    %526 = vmatprep.subr.mxu0 0.0
    %527 = vmatpush1.msra.mxu0 0.0
    %528 = vmatprep.subr.mxu0 0.0
    %529 = vmatpush1.msra.mxu0 0.0
    %530 = vmatprep.subr.mxu0 0.0
    %531 = vmatpush1.msra.mxu0 0.0
    %532 = vmatprep.subr.mxu0 0.0
    %533 = vmatpush1.msra.mxu0 0.0
    %534 = vmatprep.subr.mxu0 0.0
    %535 = vmatpush1.msra.mxu0 0.0
    %536 = vmatprep.subr.mxu0 0.0
    %537 = vmatpush1.msra.mxu0 0.0
    %538 = vmatprep.subr.mxu0 0.0
    %539 = vmatpush1.msra.mxu0 0.0
    %540 = vmatprep.subr.mxu0 0.0
    %541 = vmatpush1.msra.mxu0 0.0
    %542 = vmatprep.subr.mxu0 0.0
    %543 = vmatpush1.msra.mxu0 0.0
    %544 = vmatprep.mubr.f32.mxu0 0.0
    %545 = vmatmul.mubr.f32.gmra.mrb[0].mxu0 %v474
    %v546 = vpop.f32.mrb[0].mxu0
    %v547 = vadd.f32 0.0, %v546
    %v548 = vpop.f32.mrb[0].mxu0
    %v549 = vadd.f32 0.0, %v548
    %550 = vdwg.mxu0
    %551 = vmatprep.subr.mxu0 %v413
    %552 = vmatpush1.msra.mxu0 %v412
    %553 = vmatprep.subr.mxu0 %v417
    %554 = vmatpush1.msra.mxu0 %v416
    %555 = vmatprep.subr.mxu0 %v421
    %556 = vmatpush1.msra.mxu0 %v420
    %557 = vmatprep.subr.mxu0 %v425
    %558 = vmatpush1.msra.mxu0 %v424
    %559 = vmatprep.subr.mxu0 %v429
    %560 = vmatpush1.msra.mxu0 %v428
    %561 = vmatprep.subr.mxu0 %v433
    %562 = vmatpush1.msra.mxu0 %v432
    %563 = vmatprep.subr.mxu0 %v437
    %564 = vmatpush1.msra.mxu0 %v436
    %565 = vmatprep.subr.mxu0 %v441
    %566 = vmatpush1.msra.mxu0 %v440
    %567 = vmatprep.subr.mxu0 %v445
    %568 = vmatpush1.msra.mxu0 %v444
    %569 = vmatprep.subr.mxu0 %v449
    %570 = vmatpush1.msra.mxu0 %v448
    %571 = vmatprep.subr.mxu0 %v453
    %572 = vmatpush1.msra.mxu0 %v452
    %573 = vmatprep.subr.mxu0 %v457
    %574 = vmatpush1.msra.mxu0 %v456
    %575 = vmatprep.subr.mxu0 %v461
    %576 = vmatpush1.msra.mxu0 %v460
    %577 = vmatprep.subr.mxu0 %v465
    %578 = vmatpush1.msra.mxu0 %v464
    %579 = vmatprep.subr.mxu0 %v469
    %580 = vmatpush1.msra.mxu0 %v468
    %581 = vmatprep.subr.mxu0 %v473
    %582 = vmatpush1.msra.mxu0 %v472
    %583 = vmatprep.subr.mxu0 0.0
    %584 = vmatpush1.msra.mxu0 0.0
    %585 = vmatprep.subr.mxu0 0.0
    %586 = vmatpush1.msra.mxu0 0.0
    %587 = vmatprep.subr.mxu0 0.0
    %588 = vmatpush1.msra.mxu0 0.0
    %589 = vmatprep.subr.mxu0 0.0
    %590 = vmatpush1.msra.mxu0 0.0
    %591 = vmatprep.subr.mxu0 0.0
    %592 = vmatpush1.msra.mxu0 0.0
    %593 = vmatprep.subr.mxu0 0.0
    %594 = vmatpush1.msra.mxu0 0.0
    %595 = vmatprep.subr.mxu0 0.0
    %596 = vmatpush1.msra.mxu0 0.0
    %597 = vmatprep.subr.mxu0 0.0
    %598 = vmatpush1.msra.mxu0 0.0
    %599 = vmatprep.subr.mxu0 0.0
    %600 = vmatpush1.msra.mxu0 0.0
    %601 = vmatprep.subr.mxu0 0.0
    %602 = vmatpush1.msra.mxu0 0.0
    %603 = vmatprep.subr.mxu0 0.0
    %604 = vmatpush1.msra.mxu0 0.0
    %605 = vmatprep.subr.mxu0 0.0
    %606 = vmatpush1.msra.mxu0 0.0
    %607 = vmatprep.subr.mxu0 0.0
    %608 = vmatpush1.msra.mxu0 0.0
    %609 = vmatprep.subr.mxu0 0.0
    %610 = vmatpush1.msra.mxu0 0.0
    %611 = vmatprep.subr.mxu0 0.0
    %612 = vmatpush1.msra.mxu0 0.0
    %613 = vmatprep.subr.mxu0 0.0
    %614 = vmatpush1.msra.mxu0 0.0
    %615 = vmatprep.mubr.f32.mxu0 0.0
    %616 = vmatmul.mubr.f32.gmra.mrb[0].mxu0 %v474
    %v617 = vpop.f32.mrb[0].mxu0
    %v618 = vadd.f32 0.0, %v617
    %v619 = vpop.f32.mrb[0].mxu0
    %v620 = vadd.f32 0.0, %v619
    %621 = vdwg.mxu0
    %v622 = vadd.f32 %v476, %v547
    %v623 = vadd.f32 %v477, %v549
    %v624 = vadd.f32 %v478, %v618
    %v625 = vadd.f32 %v479, %v620
    %v626 = vxor.u32 %v622, 2147483648
    %v627 = vmul.f32 %v626, 1.442695
    %v628 = vpow.pop %v627
    %v629 = vadd.f32 %v628, 1.0
    %v630 = vrcp.pop %v629
    %v631 = vmul.f32 1.0, %v630
    %v632 = vxor.u32 %v623, 2147483648
    %v633 = vmul.f32 %v632, 1.442695
    %v634 = vpow.pop %v633
    %v635 = vadd.f32 %v634, 1.0
    %v636 = vrcp.pop %v635
    %v637 = vmul.f32 1.0, %v636
    %v638 = vtanh.pop %v624
    %v639 = vxor.u32 %v625, 2147483648
    %v640 = vmul.f32 %v639, 1.442695
    %v641 = vpow.pop %v640
    %v642 = vadd.f32 %v641, 1.0
    %v643 = vrcp.pop %v642
    %v644 = vmul.f32 1.0, %v643
    %v645 = vmul.f32 %v637, %v475
    %v646 = vmul.f32 %v631, %v638
    %v647 = vadd.f32 %v645, %v646
    %v648 = vtanh.pop %v647
    %v649 = vmul.f32 %v644, %v648
    %650 = vst [vmem:[#allocation13] sm:$0xff] %v649
    %s651 = scalar_lea.vmem [#allocation2], 32
    %v652 = vld [vmem:[%s651] sm:$0xff]
    %v653 = vld [vmem:[%s651 + $0x8] sm:$0xff]
    %v654 = vld [vmem:[%s651 + $0x10] sm:$0xff]
    %v655 = vld [vmem:[%s651 + $0x18] sm:$0xff]
    %656 = vmatprep.subr.mxu0 %v411
    %657 = vmatpush1.msra.mxu0 %v410
    %658 = vmatprep.subr.mxu0 %v415
    %659 = vmatpush1.msra.mxu0 %v414
    %660 = vmatprep.subr.mxu0 %v419
    %661 = vmatpush1.msra.mxu0 %v418
    %662 = vmatprep.subr.mxu0 %v423
    %663 = vmatpush1.msra.mxu0 %v422
    %664 = vmatprep.subr.mxu0 %v427
    %665 = vmatpush1.msra.mxu0 %v426
    %666 = vmatprep.subr.mxu0 %v431
    %667 = vmatpush1.msra.mxu0 %v430
    %668 = vmatprep.subr.mxu0 %v435
    %669 = vmatpush1.msra.mxu0 %v434
    %670 = vmatprep.subr.mxu0 %v439
    %671 = vmatpush1.msra.mxu0 %v438
    %672 = vmatprep.subr.mxu0 %v443
    %673 = vmatpush1.msra.mxu0 %v442
    %674 = vmatprep.subr.mxu0 %v447
    %675 = vmatpush1.msra.mxu0 %v446
    %676 = vmatprep.subr.mxu0 %v451
    %677 = vmatpush1.msra.mxu0 %v450
    %678 = vmatprep.subr.mxu0 %v455
    %679 = vmatpush1.msra.mxu0 %v454
    %680 = vmatprep.subr.mxu0 %v459
    %681 = vmatpush1.msra.mxu0 %v458
    %682 = vmatprep.subr.mxu0 %v463
    %683 = vmatpush1.msra.mxu0 %v462
    %684 = vmatprep.subr.mxu0 %v467
    %685 = vmatpush1.msra.mxu0 %v466
    %686 = vmatprep.subr.mxu0 %v471
    %687 = vmatpush1.msra.mxu0 %v470
    %688 = vmatprep.subr.mxu0 0.0
    %689 = vmatpush1.msra.mxu0 0.0
    %690 = vmatprep.subr.mxu0 0.0
    %691 = vmatpush1.msra.mxu0 0.0
    %692 = vmatprep.subr.mxu0 0.0
    %693 = vmatpush1.msra.mxu0 0.0
    %694 = vmatprep.subr.mxu0 0.0
    %695 = vmatpush1.msra.mxu0 0.0
    %696 = vmatprep.subr.mxu0 0.0
    %697 = vmatpush1.msra.mxu0 0.0
    %698 = vmatprep.subr.mxu0 0.0
    %699 = vmatpush1.msra.mxu0 0.0
    %700 = vmatprep.subr.mxu0 0.0
    %701 = vmatpush1.msra.mxu0 0.0
    %702 = vmatprep.subr.mxu0 0.0
    %703 = vmatpush1.msra.mxu0 0.0
    %704 = vmatprep.subr.mxu0 0.0
    %705 = vmatpush1.msra.mxu0 0.0
    %706 = vmatprep.subr.mxu0 0.0
    %707 = vmatpush1.msra.mxu0 0.0
    %708 = vmatprep.subr.mxu0 0.0
    %709 = vmatpush1.msra.mxu0 0.0
    %710 = vmatprep.subr.mxu0 0.0
    %711 = vmatpush1.msra.mxu0 0.0
    %712 = vmatprep.subr.mxu0 0.0
    %713 = vmatpush1.msra.mxu0 0.0
    %714 = vmatprep.subr.mxu0 0.0
    %715 = vmatpush1.msra.mxu0 0.0
    %716 = vmatprep.subr.mxu0 0.0
    %717 = vmatpush1.msra.mxu0 0.0
    %718 = vmatprep.subr.mxu0 0.0
    %719 = vmatpush1.msra.mxu0 0.0
    %720 = vmatprep.mubr.f32.mxu0 0.0
    %721 = vmatmul.mubr.f32.gmra.mrb[0].mxu0 %v649
    %v722 = vpop.f32.mrb[0].mxu0
    %v723 = vadd.f32 0.0, %v722
    %v724 = vpop.f32.mrb[0].mxu0
    %v725 = vadd.f32 0.0, %v724
    %726 = vdwg.mxu0
    %727 = vmatprep.subr.mxu0 %v413
    %728 = vmatpush1.msra.mxu0 %v412
    %729 = vmatprep.subr.mxu0 %v417
    %730 = vmatpush1.msra.mxu0 %v416
    %731 = vmatprep.subr.mxu0 %v421
    %732 = vmatpush1.msra.mxu0 %v420
    %733 = vmatprep.subr.mxu0 %v425
    %734 = vmatpush1.msra.mxu0 %v424
    %735 = vmatprep.subr.mxu0 %v429
    %736 = vmatpush1.msra.mxu0 %v428
    %737 = vmatprep.subr.mxu0 %v433
    %738 = vmatpush1.msra.mxu0 %v432
    %739 = vmatprep.subr.mxu0 %v437
    %740 = vmatpush1.msra.mxu0 %v436
    %741 = vmatprep.subr.mxu0 %v441
    %742 = vmatpush1.msra.mxu0 %v440
    %743 = vmatprep.subr.mxu0 %v445
    %744 = vmatpush1.msra.mxu0 %v444
    %745 = vmatprep.subr.mxu0 %v449
    %746 = vmatpush1.msra.mxu0 %v448
    %747 = vmatprep.subr.mxu0 %v453
    %748 = vmatpush1.msra.mxu0 %v452
    %749 = vmatprep.subr.mxu0 %v457
    %750 = vmatpush1.msra.mxu0 %v456
    %751 = vmatprep.subr.mxu0 %v461
    %752 = vmatpush1.msra.mxu0 %v460
    %753 = vmatprep.subr.mxu0 %v465
    %754 = vmatpush1.msra.mxu0 %v464
    %755 = vmatprep.subr.mxu0 %v469
    %756 = vmatpush1.msra.mxu0 %v468
    %757 = vmatprep.subr.mxu0 %v473
    %758 = vmatpush1.msra.mxu0 %v472
    %759 = vmatprep.subr.mxu0 0.0
    %760 = vmatpush1.msra.mxu0 0.0
    %761 = vmatprep.subr.mxu0 0.0
    %762 = vmatpush1.msra.mxu0 0.0
    %763 = vmatprep.subr.mxu0 0.0
    %764 = vmatpush1.msra.mxu0 0.0
    %765 = vmatprep.subr.mxu0 0.0
    %766 = vmatpush1.msra.mxu0 0.0
    %767 = vmatprep.subr.mxu0 0.0
    %768 = vmatpush1.msra.mxu0 0.0
    %769 = vmatprep.subr.mxu0 0.0
    %770 = vmatpush1.msra.mxu0 0.0
    %771 = vmatprep.subr.mxu0 0.0
    %772 = vmatpush1.msra.mxu0 0.0
    %773 = vmatprep.subr.mxu0 0.0
    %774 = vmatpush1.msra.mxu0 0.0
    %775 = vmatprep.subr.mxu0 0.0
    %776 = vmatpush1.msra.mxu0 0.0
    %777 = vmatprep.subr.mxu0 0.0
    %778 = vmatpush1.msra.mxu0 0.0
    %779 = vmatprep.subr.mxu0 0.0
    %780 = vmatpush1.msra.mxu0 0.0
    %781 = vmatprep.subr.mxu0 0.0
    %782 = vmatpush1.msra.mxu0 0.0
    %783 = vmatprep.subr.mxu0 0.0
    %784 = vmatpush1.msra.mxu0 0.0
    %785 = vmatprep.subr.mxu0 0.0
    %786 = vmatpush1.msra.mxu0 0.0
    %787 = vmatprep.subr.mxu0 0.0
    %788 = vmatpush1.msra.mxu0 0.0
    %789 = vmatprep.subr.mxu0 0.0
    %790 = vmatpush1.msra.mxu0 0.0
    %791 = vmatprep.mubr.f32.mxu0 0.0
    %792 = vmatmul.mubr.f32.gmra.mrb[0].mxu0 %v649
    %v793 = vpop.f32.mrb[0].mxu0
    %v794 = vadd.f32 0.0, %v793
    %v795 = vpop.f32.mrb[0].mxu0
    %v796 = vadd.f32 0.0, %v795
    %797 = vdwg.mxu0
    %v798 = vadd.f32 %v652, %v723
    %v799 = vadd.f32 %v653, %v725
    %v800 = vadd.f32 %v654, %v794
    %v801 = vadd.f32 %v655, %v796
    %v802 = vxor.u32 %v798, 2147483648
    %v803 = vmul.f32 %v802, 1.442695
    %v804 = vpow.pop %v803
    %v805 = vadd.f32 %v804, 1.0
    %v806 = vrcp.pop %v805
    %v807 = vmul.f32 1.0, %v806
    %v808 = vxor.u32 %v799, 2147483648
    %v809 = vmul.f32 %v808, 1.442695
    %v810 = vpow.pop %v809
    %v811 = vadd.f32 %v810, 1.0
    %v812 = vrcp.pop %v811
    %v813 = vmul.f32 1.0, %v812
    %v814 = vtanh.pop %v800
    %v815 = vxor.u32 %v801, 2147483648
    %v816 = vmul.f32 %v815, 1.442695
    %v817 = vpow.pop %v816
    %v818 = vadd.f32 %v817, 1.0
    %v819 = vrcp.pop %v818
    %v820 = vmul.f32 1.0, %v819
    %v821 = vmul.f32 %v813, %v647
    %v822 = vmul.f32 %v807, %v814
    %v823 = vadd.f32 %v821, %v822
    %v824 = vtanh.pop %v823
    %v825 = vmul.f32 %v820, %v824
    %s826 = scalar_lea.vmem [#allocation13], 8
    %827 = vst [vmem:[%s826] sm:$0xff] %v825
    %s828 = scalar_lea.vmem [#allocation2], 64
    %v829 = vld [vmem:[%s828] sm:$0xff]
    %v830 = vld [vmem:[%s828 + $0x8] sm:$0xff]
    %v831 = vld [vmem:[%s828 + $0x10] sm:$0xff]
    %v832 = vld [vmem:[%s828 + $0x18] sm:$0xff]
    %833 = vmatprep.subr.mxu0 %v411
    %834 = vmatpush1.msra.mxu0 %v410
    %835 = vmatprep.subr.mxu0 %v415
    %836 = vmatpush1.msra.mxu0 %v414
    %837 = vmatprep.subr.mxu0 %v419
    %838 = vmatpush1.msra.mxu0 %v418
    %839 = vmatprep.subr.mxu0 %v423
    %840 = vmatpush1.msra.mxu0 %v422
    %841 = vmatprep.subr.mxu0 %v427
    %842 = vmatpush1.msra.mxu0 %v426
    %843 = vmatprep.subr.mxu0 %v431
    %844 = vmatpush1.msra.mxu0 %v430
    %845 = vmatprep.subr.mxu0 %v435
    %846 = vmatpush1.msra.mxu0 %v434
    %847 = vmatprep.subr.mxu0 %v439
    %848 = vmatpush1.msra.mxu0 %v438
    %849 = vmatprep.subr.mxu0 %v443
    %850 = vmatpush1.msra.mxu0 %v442
    %851 = vmatprep.subr.mxu0 %v447
    %852 = vmatpush1.msra.mxu0 %v446
    %853 = vmatprep.subr.mxu0 %v451
    %854 = vmatpush1.msra.mxu0 %v450
    %855 = vmatprep.subr.mxu0 %v455
    %856 = vmatpush1.msra.mxu0 %v454
    %857 = vmatprep.subr.mxu0 %v459
    %858 = vmatpush1.msra.mxu0 %v458
    %859 = vmatprep.subr.mxu0 %v463
    %860 = vmatpush1.msra.mxu0 %v462
    %861 = vmatprep.subr.mxu0 %v467
    %862 = vmatpush1.msra.mxu0 %v466
    %863 = vmatprep.subr.mxu0 %v471
    %864 = vmatpush1.msra.mxu0 %v470
    %865 = vmatprep.subr.mxu0 0.0
    %866 = vmatpush1.msra.mxu0 0.0
    %867 = vmatprep.subr.mxu0 0.0
    %868 = vmatpush1.msra.mxu0 0.0
    %869 = vmatprep.subr.mxu0 0.0
    %870 = vmatpush1.msra.mxu0 0.0
    %871 = vmatprep.subr.mxu0 0.0
    %872 = vmatpush1.msra.mxu0 0.0
    %873 = vmatprep.subr.mxu0 0.0
    %874 = vmatpush1.msra.mxu0 0.0
    %875 = vmatprep.subr.mxu0 0.0
    %876 = vmatpush1.msra.mxu0 0.0
    %877 = vmatprep.subr.mxu0 0.0
    %878 = vmatpush1.msra.mxu0 0.0
    %879 = vmatprep.subr.mxu0 0.0
    %880 = vmatpush1.msra.mxu0 0.0
    %881 = vmatprep.subr.mxu0 0.0
    %882 = vmatpush1.msra.mxu0 0.0
    %883 = vmatprep.subr.mxu0 0.0
    %884 = vmatpush1.msra.mxu0 0.0
    %885 = vmatprep.subr.mxu0 0.0
    %886 = vmatpush1.msra.mxu0 0.0
    %887 = vmatprep.subr.mxu0 0.0
    %888 = vmatpush1.msra.mxu0 0.0
    %889 = vmatprep.subr.mxu0 0.0
    %890 = vmatpush1.msra.mxu0 0.0
    %891 = vmatprep.subr.mxu0 0.0
    %892 = vmatpush1.msra.mxu0 0.0
    %893 = vmatprep.subr.mxu0 0.0
    %894 = vmatpush1.msra.mxu0 0.0
    %895 = vmatprep.subr.mxu0 0.0
    %896 = vmatpush1.msra.mxu0 0.0
    %897 = vmatprep.mubr.f32.mxu0 0.0
    %898 = vmatmul.mubr.f32.gmra.mrb[0].mxu0 %v825
    %v899 = vpop.f32.mrb[0].mxu0
    %v900 = vadd.f32 0.0, %v899
    %v901 = vpop.f32.mrb[0].mxu0
    %v902 = vadd.f32 0.0, %v901
    %903 = vdwg.mxu0
    %904 = vmatprep.subr.mxu0 %v413
    %905 = vmatpush1.msra.mxu0 %v412
    %906 = vmatprep.subr.mxu0 %v417
    %907 = vmatpush1.msra.mxu0 %v416
    %908 = vmatprep.subr.mxu0 %v421
    %909 = vmatpush1.msra.mxu0 %v420
    %910 = vmatprep.subr.mxu0 %v425
    %911 = vmatpush1.msra.mxu0 %v424
    %912 = vmatprep.subr.mxu0 %v429
    %913 = vmatpush1.msra.mxu0 %v428
    %914 = vmatprep.subr.mxu0 %v433
    %915 = vmatpush1.msra.mxu0 %v432
    %916 = vmatprep.subr.mxu0 %v437
    %917 = vmatpush1.msra.mxu0 %v436
    %918 = vmatprep.subr.mxu0 %v441
    %919 = vmatpush1.msra.mxu0 %v440
    %920 = vmatprep.subr.mxu0 %v445
    %921 = vmatpush1.msra.mxu0 %v444
    %922 = vmatprep.subr.mxu0 %v449
    %923 = vmatpush1.msra.mxu0 %v448
    %924 = vmatprep.subr.mxu0 %v453
    %925 = vmatpush1.msra.mxu0 %v452
    %926 = vmatprep.subr.mxu0 %v457
    %927 = vmatpush1.msra.mxu0 %v456
    %928 = vmatprep.subr.mxu0 %v461
    %929 = vmatpush1.msra.mxu0 %v460
    %930 = vmatprep.subr.mxu0 %v465
    %931 = vmatpush1.msra.mxu0 %v464
    %932 = vmatprep.subr.mxu0 %v469
    %933 = vmatpush1.msra.mxu0 %v468
    %934 = vmatprep.subr.mxu0 %v473
    %935 = vmatpush1.msra.mxu0 %v472
    %936 = vmatprep.subr.mxu0 0.0
    %937 = vmatpush1.msra.mxu0 0.0
    %938 = vmatprep.subr.mxu0 0.0
    %939 = vmatpush1.msra.mxu0 0.0
    %940 = vmatprep.subr.mxu0 0.0
    %941 = vmatpush1.msra.mxu0 0.0
    %942 = vmatprep.subr.mxu0 0.0
    %943 = vmatpush1.msra.mxu0 0.0
    %944 = vmatprep.subr.mxu0 0.0
    %945 = vmatpush1.msra.mxu0 0.0
    %946 = vmatprep.subr.mxu0 0.0
    %947 = vmatpush1.msra.mxu0 0.0
    %948 = vmatprep.subr.mxu0 0.0
    %949 = vmatpush1.msra.mxu0 0.0
    %950 = vmatprep.subr.mxu0 0.0
    %951 = vmatpush1.msra.mxu0 0.0
    %952 = vmatprep.subr.mxu0 0.0
    %953 = vmatpush1.msra.mxu0 0.0
    %954 = vmatprep.subr.mxu0 0.0
    %955 = vmatpush1.msra.mxu0 0.0
    %956 = vmatprep.subr.mxu0 0.0
    %957 = vmatpush1.msra.mxu0 0.0
    %958 = vmatprep.subr.mxu0 0.0
    %959 = vmatpush1.msra.mxu0 0.0
    %960 = vmatprep.subr.mxu0 0.0
    %961 = vmatpush1.msra.mxu0 0.0
    %962 = vmatprep.subr.mxu0 0.0
    %963 = vmatpush1.msra.mxu0 0.0
    %964 = vmatprep.subr.mxu0 0.0
    %965 = vmatpush1.msra.mxu0 0.0
    %966 = vmatprep.subr.mxu0 0.0
    %967 = vmatpush1.msra.mxu0 0.0
    %968 = vmatprep.mubr.f32.mxu0 0.0
    %969 = vmatmul.mubr.f32.gmra.mrb[0].mxu0 %v825
    %v970 = vpop.f32.mrb[0].mxu0
    %v971 = vadd.f32 0.0, %v970
    %v972 = vpop.f32.mrb[0].mxu0
    %v973 = vadd.f32 0.0, %v972
    %974 = vdwg.mxu0
    %v975 = vadd.f32 %v829, %v900
    %v976 = vadd.f32 %v830, %v902
    %v977 = vadd.f32 %v831, %v971
    %v978 = vadd.f32 %v832, %v973
    %v979 = vxor.u32 %v975, 2147483648
    %v980 = vmul.f32 %v979, 1.442695
    %v981 = vpow.pop %v980
    %v982 = vadd.f32 %v981, 1.0
    %v983 = vrcp.pop %v982
    %v984 = vmul.f32 1.0, %v983
    %v985 = vxor.u32 %v976, 2147483648
    %v986 = vmul.f32 %v985, 1.442695
    %v987 = vpow.pop %v986
    %v988 = vadd.f32 %v987, 1.0
    %v989 = vrcp.pop %v988
    %v990 = vmul.f32 1.0, %v989
    %v991 = vtanh.pop %v977
    %v992 = vxor.u32 %v978, 2147483648
    %v993 = vmul.f32 %v992, 1.442695
    %v994 = vpow.pop %v993
    %v995 = vadd.f32 %v994, 1.0
    %v996 = vrcp.pop %v995
    %v997 = vmul.f32 1.0, %v996
    %v998 = vmul.f32 %v990, %v823
    %v999 = vmul.f32 %v984, %v991
    %v1000 = vadd.f32 %v998, %v999
    %v1001 = vtanh.pop %v1000
    %v1002 = vmul.f32 %v997, %v1001
    %s1003 = scalar_lea.vmem [#allocation13], 16
    %1004 = vst [vmem:[%s1003] sm:$0xff] %v1002
    %s1005 = scalar_lea.vmem [#allocation2], 96
    %v1006 = vld [vmem:[%s1005] sm:$0xff]
    %v1007 = vld [vmem:[%s1005 + $0x8] sm:$0xff]
    %v1008 = vld [vmem:[%s1005 + $0x10] sm:$0xff]
    %v1009 = vld [vmem:[%s1005 + $0x18] sm:$0xff]
    %1010 = vmatprep.subr.mxu0 %v411
    %1011 = vmatpush1.msra.mxu0 %v410
    %1012 = vmatprep.subr.mxu0 %v415
    %1013 = vmatpush1.msra.mxu0 %v414
    %1014 = vmatprep.subr.mxu0 %v419
    %1015 = vmatpush1.msra.mxu0 %v418
    %1016 = vmatprep.subr.mxu0 %v423
    %1017 = vmatpush1.msra.mxu0 %v422
    %1018 = vmatprep.subr.mxu0 %v427
    %1019 = vmatpush1.msra.mxu0 %v426
    %1020 = vmatprep.subr.mxu0 %v431
    %1021 = vmatpush1.msra.mxu0 %v430
    %1022 = vmatprep.subr.mxu0 %v435
    %1023 = vmatpush1.msra.mxu0 %v434
    %1024 = vmatprep.subr.mxu0 %v439
    %1025 = vmatpush1.msra.mxu0 %v438
    %1026 = vmatprep.subr.mxu0 %v443
    %1027 = vmatpush1.msra.mxu0 %v442
    %1028 = vmatprep.subr.mxu0 %v447
    %1029 = vmatpush1.msra.mxu0 %v446
    %1030 = vmatprep.subr.mxu0 %v451
    %1031 = vmatpush1.msra.mxu0 %v450
    %1032 = vmatprep.subr.mxu0 %v455
    %1033 = vmatpush1.msra.mxu0 %v454
    %1034 = vmatprep.subr.mxu0 %v459
    %1035 = vmatpush1.msra.mxu0 %v458
    %1036 = vmatprep.subr.mxu0 %v463
    %1037 = vmatpush1.msra.mxu0 %v462
    %1038 = vmatprep.subr.mxu0 %v467
    %1039 = vmatpush1.msra.mxu0 %v466
    %1040 = vmatprep.subr.mxu0 %v471
    %1041 = vmatpush1.msra.mxu0 %v470
    %1042 = vmatprep.subr.mxu0 0.0
    %1043 = vmatpush1.msra.mxu0 0.0
    %1044 = vmatprep.subr.mxu0 0.0
    %1045 = vmatpush1.msra.mxu0 0.0
    %1046 = vmatprep.subr.mxu0 0.0
    %1047 = vmatpush1.msra.mxu0 0.0
    %1048 = vmatprep.subr.mxu0 0.0
    %1049 = vmatpush1.msra.mxu0 0.0
    %1050 = vmatprep.subr.mxu0 0.0
    %1051 = vmatpush1.msra.mxu0 0.0
    %1052 = vmatprep.subr.mxu0 0.0
    %1053 = vmatpush1.msra.mxu0 0.0
    %1054 = vmatprep.subr.mxu0 0.0
    %1055 = vmatpush1.msra.mxu0 0.0
    %1056 = vmatprep.subr.mxu0 0.0
    %1057 = vmatpush1.msra.mxu0 0.0
    %1058 = vmatprep.subr.mxu0 0.0
    %1059 = vmatpush1.msra.mxu0 0.0
    %1060 = vmatprep.subr.mxu0 0.0
    %1061 = vmatpush1.msra.mxu0 0.0
    %1062 = vmatprep.subr.mxu0 0.0
    %1063 = vmatpush1.msra.mxu0 0.0
    %1064 = vmatprep.subr.mxu0 0.0
    %1065 = vmatpush1.msra.mxu0 0.0
    %1066 = vmatprep.subr.mxu0 0.0
    %1067 = vmatpush1.msra.mxu0 0.0
    %1068 = vmatprep.subr.mxu0 0.0
    %1069 = vmatpush1.msra.mxu0 0.0
    %1070 = vmatprep.subr.mxu0 0.0
    %1071 = vmatpush1.msra.mxu0 0.0
    %1072 = vmatprep.subr.mxu0 0.0
    %1073 = vmatpush1.msra.mxu0 0.0
    %1074 = vmatprep.mubr.f32.mxu0 0.0
    %1075 = vmatmul.mubr.f32.gmra.mrb[0].mxu0 %v1002
    %v1076 = vpop.f32.mrb[0].mxu0
    %v1077 = vadd.f32 0.0, %v1076
    %v1078 = vpop.f32.mrb[0].mxu0
    %v1079 = vadd.f32 0.0, %v1078
    %1080 = vdwg.mxu0
    %1081 = vmatprep.subr.mxu0 %v413
    %1082 = vmatpush1.msra.mxu0 %v412
    %1083 = vmatprep.subr.mxu0 %v417
    %1084 = vmatpush1.msra.mxu0 %v416
    %1085 = vmatprep.subr.mxu0 %v421
    %1086 = vmatpush1.msra.mxu0 %v420
    %1087 = vmatprep.subr.mxu0 %v425
    %1088 = vmatpush1.msra.mxu0 %v424
    %1089 = vmatprep.subr.mxu0 %v429
    %1090 = vmatpush1.msra.mxu0 %v428
    %1091 = vmatprep.subr.mxu0 %v433
    %1092 = vmatpush1.msra.mxu0 %v432
    %1093 = vmatprep.subr.mxu0 %v437
    %1094 = vmatpush1.msra.mxu0 %v436
    %1095 = vmatprep.subr.mxu0 %v441
    %1096 = vmatpush1.msra.mxu0 %v440
    %1097 = vmatprep.subr.mxu0 %v445
    %1098 = vmatpush1.msra.mxu0 %v444
    %1099 = vmatprep.subr.mxu0 %v449
    %1100 = vmatpush1.msra.mxu0 %v448
    %1101 = vmatprep.subr.mxu0 %v453
    %1102 = vmatpush1.msra.mxu0 %v452
    %1103 = vmatprep.subr.mxu0 %v457
    %1104 = vmatpush1.msra.mxu0 %v456
    %1105 = vmatprep.subr.mxu0 %v461
    %1106 = vmatpush1.msra.mxu0 %v460
    %1107 = vmatprep.subr.mxu0 %v465
    %1108 = vmatpush1.msra.mxu0 %v464
    %1109 = vmatprep.subr.mxu0 %v469
    %1110 = vmatpush1.msra.mxu0 %v468
    %1111 = vmatprep.subr.mxu0 %v473
    %1112 = vmatpush1.msra.mxu0 %v472
    %1113 = vmatprep.subr.mxu0 0.0
    %1114 = vmatpush1.msra.mxu0 0.0
    %1115 = vmatprep.subr.mxu0 0.0
    %1116 = vmatpush1.msra.mxu0 0.0
    %1117 = vmatprep.subr.mxu0 0.0
    %1118 = vmatpush1.msra.mxu0 0.0
    %1119 = vmatprep.subr.mxu0 0.0
    %1120 = vmatpush1.msra.mxu0 0.0
    %1121 = vmatprep.subr.mxu0 0.0
    %1122 = vmatpush1.msra.mxu0 0.0
    %1123 = vmatprep.subr.mxu0 0.0
    %1124 = vmatpush1.msra.mxu0 0.0
    %1125 = vmatprep.subr.mxu0 0.0
    %1126 = vmatpush1.msra.mxu0 0.0
    %1127 = vmatprep.subr.mxu0 0.0
    %1128 = vmatpush1.msra.mxu0 0.0
    %1129 = vmatprep.subr.mxu0 0.0
    %1130 = vmatpush1.msra.mxu0 0.0
    %1131 = vmatprep.subr.mxu0 0.0
    %1132 = vmatpush1.msra.mxu0 0.0
    %1133 = vmatprep.subr.mxu0 0.0
    %1134 = vmatpush1.msra.mxu0 0.0
    %1135 = vmatprep.subr.mxu0 0.0
    %1136 = vmatpush1.msra.mxu0 0.0
    %1137 = vmatprep.subr.mxu0 0.0
    %1138 = vmatpush1.msra.mxu0 0.0
    %1139 = vmatprep.subr.mxu0 0.0
    %1140 = vmatpush1.msra.mxu0 0.0
    %1141 = vmatprep.subr.mxu0 0.0
    %1142 = vmatpush1.msra.mxu0 0.0
    %1143 = vmatprep.subr.mxu0 0.0
    %1144 = vmatpush1.msra.mxu0 0.0
    %1145 = vmatprep.mubr.f32.mxu0 0.0
    %1146 = vmatmul.mubr.f32.gmra.mrb[0].mxu0 %v1002
    %v1147 = vpop.f32.mrb[0].mxu0
    %v1148 = vadd.f32 0.0, %v1147
    %v1149 = vpop.f32.mrb[0].mxu0
    %v1150 = vadd.f32 0.0, %v1149
    %1151 = vdwg.mxu0
    %v1152 = vadd.f32 %v1006, %v1077
    %v1153 = vadd.f32 %v1007, %v1079
    %v1154 = vadd.f32 %v1008, %v1148
    %v1155 = vadd.f32 %v1009, %v1150
    %v1156 = vxor.u32 %v1152, 2147483648
    %v1157 = vmul.f32 %v1156, 1.442695
    %v1158 = vpow.pop %v1157
    %v1159 = vadd.f32 %v1158, 1.0
    %v1160 = vrcp.pop %v1159
    %v1161 = vmul.f32 1.0, %v1160
    %v1162 = vxor.u32 %v1153, 2147483648
    %v1163 = vmul.f32 %v1162, 1.442695
    %v1164 = vpow.pop %v1163
    %v1165 = vadd.f32 %v1164, 1.0
    %v1166 = vrcp.pop %v1165
    %v1167 = vmul.f32 1.0, %v1166
    %v1168 = vtanh.pop %v1154
    %v1169 = vxor.u32 %v1155, 2147483648
    %v1170 = vmul.f32 %v1169, 1.442695
    %v1171 = vpow.pop %v1170
    %v1172 = vadd.f32 %v1171, 1.0
    %v1173 = vrcp.pop %v1172
    %v1174 = vmul.f32 1.0, %v1173
    %v1175 = vmul.f32 %v1167, %v1000
    %v1176 = vmul.f32 %v1161, %v1168
    %v1177 = vadd.f32 %v1175, %v1176
    %v1178 = vtanh.pop %v1177
    %v1179 = vmul.f32 %v1174, %v1178
    %s1180 = scalar_lea.vmem [#allocation13], 24
    %1181 = vst [vmem:[%s1180] sm:$0xff] %v1179
    %s1182 = scalar_lea.vmem [#allocation2], 128
    %v1183 = vld [vmem:[%s1182] sm:$0xff]
    %v1184 = vld [vmem:[%s1182 + $0x8] sm:$0xff]
    %v1185 = vld [vmem:[%s1182 + $0x10] sm:$0xff]
    %v1186 = vld [vmem:[%s1182 + $0x18] sm:$0xff]
    %1187 = vmatprep.subr.mxu0 %v411
    %1188 = vmatpush1.msra.mxu0 %v410
    %1189 = vmatprep.subr.mxu0 %v415
    %1190 = vmatpush1.msra.mxu0 %v414
    %1191 = vmatprep.subr.mxu0 %v419
    %1192 = vmatpush1.msra.mxu0 %v418
    %1193 = vmatprep.subr.mxu0 %v423
    %1194 = vmatpush1.msra.mxu0 %v422
    %1195 = vmatprep.subr.mxu0 %v427
    %1196 = vmatpush1.msra.mxu0 %v426
    %1197 = vmatprep.subr.mxu0 %v431
    %1198 = vmatpush1.msra.mxu0 %v430
    %1199 = vmatprep.subr.mxu0 %v435
    %1200 = vmatpush1.msra.mxu0 %v434
    %1201 = vmatprep.subr.mxu0 %v439
    %1202 = vmatpush1.msra.mxu0 %v438
    %1203 = vmatprep.subr.mxu0 %v443
    %1204 = vmatpush1.msra.mxu0 %v442
    %1205 = vmatprep.subr.mxu0 %v447
    %1206 = vmatpush1.msra.mxu0 %v446
    %1207 = vmatprep.subr.mxu0 %v451
    %1208 = vmatpush1.msra.mxu0 %v450
    %1209 = vmatprep.subr.mxu0 %v455
    %1210 = vmatpush1.msra.mxu0 %v454
    %1211 = vmatprep.subr.mxu0 %v459
    %1212 = vmatpush1.msra.mxu0 %v458
    %1213 = vmatprep.subr.mxu0 %v463
    %1214 = vmatpush1.msra.mxu0 %v462
    %1215 = vmatprep.subr.mxu0 %v467
    %1216 = vmatpush1.msra.mxu0 %v466
    %1217 = vmatprep.subr.mxu0 %v471
    %1218 = vmatpush1.msra.mxu0 %v470
    %1219 = vmatprep.subr.mxu0 0.0
    %1220 = vmatpush1.msra.mxu0 0.0
    %1221 = vmatprep.subr.mxu0 0.0
    %1222 = vmatpush1.msra.mxu0 0.0
    %1223 = vmatprep.subr.mxu0 0.0
    %1224 = vmatpush1.msra.mxu0 0.0
    %1225 = vmatprep.subr.mxu0 0.0
    %1226 = vmatpush1.msra.mxu0 0.0
    %1227 = vmatprep.subr.mxu0 0.0
    %1228 = vmatpush1.msra.mxu0 0.0
    %1229 = vmatprep.subr.mxu0 0.0
    %1230 = vmatpush1.msra.mxu0 0.0
    %1231 = vmatprep.subr.mxu0 0.0
    %1232 = vmatpush1.msra.mxu0 0.0
    %1233 = vmatprep.subr.mxu0 0.0
    %1234 = vmatpush1.msra.mxu0 0.0
    %1235 = vmatprep.subr.mxu0 0.0
    %1236 = vmatpush1.msra.mxu0 0.0
    %1237 = vmatprep.subr.mxu0 0.0
    %1238 = vmatpush1.msra.mxu0 0.0
    %1239 = vmatprep.subr.mxu0 0.0
    %1240 = vmatpush1.msra.mxu0 0.0
    %1241 = vmatprep.subr.mxu0 0.0
    %1242 = vmatpush1.msra.mxu0 0.0
    %1243 = vmatprep.subr.mxu0 0.0
    %1244 = vmatpush1.msra.mxu0 0.0
    %1245 = vmatprep.subr.mxu0 0.0
    %1246 = vmatpush1.msra.mxu0 0.0
    %1247 = vmatprep.subr.mxu0 0.0
    %1248 = vmatpush1.msra.mxu0 0.0
    %1249 = vmatprep.subr.mxu0 0.0
    %1250 = vmatpush1.msra.mxu0 0.0
    %1251 = vmatprep.mubr.f32.mxu0 0.0
    %1252 = vmatmul.mubr.f32.gmra.mrb[0].mxu0 %v1179
    %v1253 = vpop.f32.mrb[0].mxu0
    %v1254 = vadd.f32 0.0, %v1253
    %v1255 = vpop.f32.mrb[0].mxu0
    %v1256 = vadd.f32 0.0, %v1255
    %1257 = vdwg.mxu0
    %1258 = vmatprep.subr.mxu0 %v413
    %1259 = vmatpush1.msra.mxu0 %v412
    %1260 = vmatprep.subr.mxu0 %v417
    %1261 = vmatpush1.msra.mxu0 %v416
    %1262 = vmatprep.subr.mxu0 %v421
    %1263 = vmatpush1.msra.mxu0 %v420
    %1264 = vmatprep.subr.mxu0 %v425
    %1265 = vmatpush1.msra.mxu0 %v424
    %1266 = vmatprep.subr.mxu0 %v429
    %1267 = vmatpush1.msra.mxu0 %v428
    %1268 = vmatprep.subr.mxu0 %v433
    %1269 = vmatpush1.msra.mxu0 %v432
    %1270 = vmatprep.subr.mxu0 %v437
    %1271 = vmatpush1.msra.mxu0 %v436
    %1272 = vmatprep.subr.mxu0 %v441
    %1273 = vmatpush1.msra.mxu0 %v440
    %1274 = vmatprep.subr.mxu0 %v445
    %1275 = vmatpush1.msra.mxu0 %v444
    %1276 = vmatprep.subr.mxu0 %v449
    %1277 = vmatpush1.msra.mxu0 %v448
    %1278 = vmatprep.subr.mxu0 %v453
    %1279 = vmatpush1.msra.mxu0 %v452
    %1280 = vmatprep.subr.mxu0 %v457
    %1281 = vmatpush1.msra.mxu0 %v456
    %1282 = vmatprep.subr.mxu0 %v461
    %1283 = vmatpush1.msra.mxu0 %v460
    %1284 = vmatprep.subr.mxu0 %v465
    %1285 = vmatpush1.msra.mxu0 %v464
    %1286 = vmatprep.subr.mxu0 %v469
    %1287 = vmatpush1.msra.mxu0 %v468
    %1288 = vmatprep.subr.mxu0 %v473
    %1289 = vmatpush1.msra.mxu0 %v472
    %1290 = vmatprep.subr.mxu0 0.0
    %1291 = vmatpush1.msra.mxu0 0.0
    %1292 = vmatprep.subr.mxu0 0.0
    %1293 = vmatpush1.msra.mxu0 0.0
    %1294 = vmatprep.subr.mxu0 0.0
    %1295 = vmatpush1.msra.mxu0 0.0
    %1296 = vmatprep.subr.mxu0 0.0
    %1297 = vmatpush1.msra.mxu0 0.0
    %1298 = vmatprep.subr.mxu0 0.0
    %1299 = vmatpush1.msra.mxu0 0.0
    %1300 = vmatprep.subr.mxu0 0.0
    %1301 = vmatpush1.msra.mxu0 0.0
    %1302 = vmatprep.subr.mxu0 0.0
    %1303 = vmatpush1.msra.mxu0 0.0
    %1304 = vmatprep.subr.mxu0 0.0
    %1305 = vmatpush1.msra.mxu0 0.0
    %1306 = vmatprep.subr.mxu0 0.0
    %1307 = vmatpush1.msra.mxu0 0.0
    %1308 = vmatprep.subr.mxu0 0.0
    %1309 = vmatpush1.msra.mxu0 0.0
    %1310 = vmatprep.subr.mxu0 0.0
    %1311 = vmatpush1.msra.mxu0 0.0
    %1312 = vmatprep.subr.mxu0 0.0
    %1313 = vmatpush1.msra.mxu0 0.0
    %1314 = vmatprep.subr.mxu0 0.0
    %1315 = vmatpush1.msra.mxu0 0.0
    %1316 = vmatprep.subr.mxu0 0.0
    %1317 = vmatpush1.msra.mxu0 0.0
    %1318 = vmatprep.subr.mxu0 0.0
    %1319 = vmatpush1.msra.mxu0 0.0
    %1320 = vmatprep.subr.mxu0 0.0
    %1321 = vmatpush1.msra.mxu0 0.0
    %1322 = vmatprep.mubr.f32.mxu0 0.0
    %1323 = vmatmul.mubr.f32.gmra.mrb[0].mxu0 %v1179
    %v1324 = vpop.f32.mrb[0].mxu0
    %v1325 = vadd.f32 0.0, %v1324
    %v1326 = vpop.f32.mrb[0].mxu0
    %v1327 = vadd.f32 0.0, %v1326
    %1328 = vdwg.mxu0
    %v1329 = vadd.f32 %v1183, %v1254
    %v1330 = vadd.f32 %v1184, %v1256
    %v1331 = vadd.f32 %v1185, %v1325
    %v1332 = vadd.f32 %v1186, %v1327
    %v1333 = vxor.u32 %v1329, 2147483648
    %v1334 = vmul.f32 %v1333, 1.442695
    %v1335 = vpow.pop %v1334
    %v1336 = vadd.f32 %v1335, 1.0
    %v1337 = vrcp.pop %v1336
    %v1338 = vmul.f32 1.0, %v1337
    %v1339 = vxor.u32 %v1330, 2147483648
    %v1340 = vmul.f32 %v1339, 1.442695
    %v1341 = vpow.pop %v1340
    %v1342 = vadd.f32 %v1341, 1.0
    %v1343 = vrcp.pop %v1342
    %v1344 = vmul.f32 1.0, %v1343
    %v1345 = vtanh.pop %v1331
    %v1346 = vxor.u32 %v1332, 2147483648
    %v1347 = vmul.f32 %v1346, 1.442695
    %v1348 = vpow.pop %v1347
    %v1349 = vadd.f32 %v1348, 1.0
    %v1350 = vrcp.pop %v1349
    %v1351 = vmul.f32 1.0, %v1350
    %v1352 = vmul.f32 %v1344, %v1177
    %v1353 = vmul.f32 %v1338, %v1345
    %v1354 = vadd.f32 %v1352, %v1353
    %v1355 = vtanh.pop %v1354
    %v1356 = vmul.f32 %v1351, %v1355
    %s1357 = scalar_lea.vmem [#allocation13], 32
    %1358 = vst [vmem:[%s1357] sm:$0xff] %v1356
    %s1359 = scalar_lea.vmem [#allocation2], 160
    %v1360 = vld [vmem:[%s1359] sm:$0xff]
    %v1361 = vld [vmem:[%s1359 + $0x8] sm:$0xff]
    %v1362 = vld [vmem:[%s1359 + $0x10] sm:$0xff]
    %v1363 = vld [vmem:[%s1359 + $0x18] sm:$0xff]
    %1364 = vmatprep.subr.mxu0 %v411
    %1365 = vmatpush1.msra.mxu0 %v410
    %1366 = vmatprep.subr.mxu0 %v415
    %1367 = vmatpush1.msra.mxu0 %v414
    %1368 = vmatprep.subr.mxu0 %v419
    %1369 = vmatpush1.msra.mxu0 %v418
    %1370 = vmatprep.subr.mxu0 %v423
    %1371 = vmatpush1.msra.mxu0 %v422
    %1372 = vmatprep.subr.mxu0 %v427
    %1373 = vmatpush1.msra.mxu0 %v426
    %1374 = vmatprep.subr.mxu0 %v431
    %1375 = vmatpush1.msra.mxu0 %v430
    %1376 = vmatprep.subr.mxu0 %v435
    %1377 = vmatpush1.msra.mxu0 %v434
    %1378 = vmatprep.subr.mxu0 %v439
    %1379 = vmatpush1.msra.mxu0 %v438
    %1380 = vmatprep.subr.mxu0 %v443
    %1381 = vmatpush1.msra.mxu0 %v442
    %1382 = vmatprep.subr.mxu0 %v447
    %1383 = vmatpush1.msra.mxu0 %v446
    %1384 = vmatprep.subr.mxu0 %v451
    %1385 = vmatpush1.msra.mxu0 %v450
    %1386 = vmatprep.subr.mxu0 %v455
    %1387 = vmatpush1.msra.mxu0 %v454
    %1388 = vmatprep.subr.mxu0 %v459
    %1389 = vmatpush1.msra.mxu0 %v458
    %1390 = vmatprep.subr.mxu0 %v463
    %1391 = vmatpush1.msra.mxu0 %v462
    %1392 = vmatprep.subr.mxu0 %v467
    %1393 = vmatpush1.msra.mxu0 %v466
    %1394 = vmatprep.subr.mxu0 %v471
    %1395 = vmatpush1.msra.mxu0 %v470
    %1396 = vmatprep.subr.mxu0 0.0
    %1397 = vmatpush1.msra.mxu0 0.0
    %1398 = vmatprep.subr.mxu0 0.0
    %1399 = vmatpush1.msra.mxu0 0.0
    %1400 = vmatprep.subr.mxu0 0.0
    %1401 = vmatpush1.msra.mxu0 0.0
    %1402 = vmatprep.subr.mxu0 0.0
    %1403 = vmatpush1.msra.mxu0 0.0
    %1404 = vmatprep.subr.mxu0 0.0
    %1405 = vmatpush1.msra.mxu0 0.0
    %1406 = vmatprep.subr.mxu0 0.0
    %1407 = vmatpush1.msra.mxu0 0.0
    %1408 = vmatprep.subr.mxu0 0.0
    %1409 = vmatpush1.msra.mxu0 0.0
    %1410 = vmatprep.subr.mxu0 0.0
    %1411 = vmatpush1.msra.mxu0 0.0
    %1412 = vmatprep.subr.mxu0 0.0
    %1413 = vmatpush1.msra.mxu0 0.0
    %1414 = vmatprep.subr.mxu0 0.0
    %1415 = vmatpush1.msra.mxu0 0.0
    %1416 = vmatprep.subr.mxu0 0.0
    %1417 = vmatpush1.msra.mxu0 0.0
    %1418 = vmatprep.subr.mxu0 0.0
    %1419 = vmatpush1.msra.mxu0 0.0
    %1420 = vmatprep.subr.mxu0 0.0
    %1421 = vmatpush1.msra.mxu0 0.0
    %1422 = vmatprep.subr.mxu0 0.0
    %1423 = vmatpush1.msra.mxu0 0.0
    %1424 = vmatprep.subr.mxu0 0.0
    %1425 = vmatpush1.msra.mxu0 0.0
    %1426 = vmatprep.subr.mxu0 0.0
    %1427 = vmatpush1.msra.mxu0 0.0
    %1428 = vmatprep.mubr.f32.mxu0 0.0
    %1429 = vmatmul.mubr.f32.gmra.mrb[0].mxu0 %v1356
    %v1430 = vpop.f32.mrb[0].mxu0
    %v1431 = vadd.f32 0.0, %v1430
    %v1432 = vpop.f32.mrb[0].mxu0
    %v1433 = vadd.f32 0.0, %v1432
    %1434 = vdwg.mxu0
    %1435 = vmatprep.subr.mxu0 %v413
    %1436 = vmatpush1.msra.mxu0 %v412
    %1437 = vmatprep.subr.mxu0 %v417
    %1438 = vmatpush1.msra.mxu0 %v416
    %1439 = vmatprep.subr.mxu0 %v421
    %1440 = vmatpush1.msra.mxu0 %v420
    %1441 = vmatprep.subr.mxu0 %v425
    %1442 = vmatpush1.msra.mxu0 %v424
    %1443 = vmatprep.subr.mxu0 %v429
    %1444 = vmatpush1.msra.mxu0 %v428
    %1445 = vmatprep.subr.mxu0 %v433
    %1446 = vmatpush1.msra.mxu0 %v432
    %1447 = vmatprep.subr.mxu0 %v437
    %1448 = vmatpush1.msra.mxu0 %v436
    %1449 = vmatprep.subr.mxu0 %v441
    %1450 = vmatpush1.msra.mxu0 %v440
    %1451 = vmatprep.subr.mxu0 %v445
    %1452 = vmatpush1.msra.mxu0 %v444
    %1453 = vmatprep.subr.mxu0 %v449
    %1454 = vmatpush1.msra.mxu0 %v448
    %1455 = vmatprep.subr.mxu0 %v453
    %1456 = vmatpush1.msra.mxu0 %v452
    %1457 = vmatprep.subr.mxu0 %v457
    %1458 = vmatpush1.msra.mxu0 %v456
    %1459 = vmatprep.subr.mxu0 %v461
    %1460 = vmatpush1.msra.mxu0 %v460
    %1461 = vmatprep.subr.mxu0 %v465
    %1462 = vmatpush1.msra.mxu0 %v464
    %1463 = vmatprep.subr.mxu0 %v469
    %1464 = vmatpush1.msra.mxu0 %v468
    %1465 = vmatprep.subr.mxu0 %v473
    %1466 = vmatpush1.msra.mxu0 %v472
    %1467 = vmatprep.subr.mxu0 0.0
    %1468 = vmatpush1.msra.mxu0 0.0
    %1469 = vmatprep.subr.mxu0 0.0
    %1470 = vmatpush1.msra.mxu0 0.0
    %1471 = vmatprep.subr.mxu0 0.0
    %1472 = vmatpush1.msra.mxu0 0.0
    %1473 = vmatprep.subr.mxu0 0.0
    %1474 = vmatpush1.msra.mxu0 0.0
    %1475 = vmatprep.subr.mxu0 0.0
    %1476 = vmatpush1.msra.mxu0 0.0
    %1477 = vmatprep.subr.mxu0 0.0
    %1478 = vmatpush1.msra.mxu0 0.0
    %1479 = vmatprep.subr.mxu0 0.0
    %1480 = vmatpush1.msra.mxu0 0.0
    %1481 = vmatprep.subr.mxu0 0.0
    %1482 = vmatpush1.msra.mxu0 0.0
    %1483 = vmatprep.subr.mxu0 0.0
    %1484 = vmatpush1.msra.mxu0 0.0
    %1485 = vmatprep.subr.mxu0 0.0
    %1486 = vmatpush1.msra.mxu0 0.0
    %1487 = vmatprep.subr.mxu0 0.0
    %1488 = vmatpush1.msra.mxu0 0.0
    %1489 = vmatprep.subr.mxu0 0.0
    %1490 = vmatpush1.msra.mxu0 0.0
    %1491 = vmatprep.subr.mxu0 0.0
    %1492 = vmatpush1.msra.mxu0 0.0
    %1493 = vmatprep.subr.mxu0 0.0
    %1494 = vmatpush1.msra.mxu0 0.0
    %1495 = vmatprep.subr.mxu0 0.0
    %1496 = vmatpush1.msra.mxu0 0.0
    %1497 = vmatprep.subr.mxu0 0.0
    %1498 = vmatpush1.msra.mxu0 0.0
    %1499 = vmatprep.mubr.f32.mxu0 0.0
    %1500 = vmatmul.mubr.f32.gmra.mrb[0].mxu0 %v1356
    %v1501 = vpop.f32.mrb[0].mxu0
    %v1502 = vadd.f32 0.0, %v1501
    %v1503 = vpop.f32.mrb[0].mxu0
    %v1504 = vadd.f32 0.0, %v1503
    %1505 = vdwg.mxu0
    %v1506 = vadd.f32 %v1360, %v1431
    %v1507 = vadd.f32 %v1361, %v1433
    %v1508 = vadd.f32 %v1362, %v1502
    %v1509 = vadd.f32 %v1363, %v1504
    %v1510 = vxor.u32 %v1506, 2147483648
    %v1511 = vmul.f32 %v1510, 1.442695
    %v1512 = vpow.pop %v1511
    %v1513 = vadd.f32 %v1512, 1.0
    %v1514 = vrcp.pop %v1513
    %v1515 = vmul.f32 1.0, %v1514
    %v1516 = vxor.u32 %v1507, 2147483648
    %v1517 = vmul.f32 %v1516, 1.442695
    %v1518 = vpow.pop %v1517
    %v1519 = vadd.f32 %v1518, 1.0
    %v1520 = vrcp.pop %v1519
    %v1521 = vmul.f32 1.0, %v1520
    %v1522 = vtanh.pop %v1508
    %v1523 = vxor.u32 %v1509, 2147483648
    %v1524 = vmul.f32 %v1523, 1.442695
    %v1525 = vpow.pop %v1524
    %v1526 = vadd.f32 %v1525, 1.0
    %v1527 = vrcp.pop %v1526
    %v1528 = vmul.f32 1.0, %v1527
    %v1529 = vmul.f32 %v1521, %v1354
    %v1530 = vmul.f32 %v1515, %v1522
    %v1531 = vadd.f32 %v1529, %v1530
    %v1532 = vtanh.pop %v1531
    %v1533 = vmul.f32 %v1528, %v1532
    %s1534 = scalar_lea.vmem [#allocation13], 40
    %1535 = vst [vmem:[%s1534] sm:$0xff] %v1533
    %s1536 = scalar_lea.vmem [#allocation2], 192
    %v1537 = vld [vmem:[%s1536] sm:$0xff]
    %v1538 = vld [vmem:[%s1536 + $0x8] sm:$0xff]
    %v1539 = vld [vmem:[%s1536 + $0x10] sm:$0xff]
    %v1540 = vld [vmem:[%s1536 + $0x18] sm:$0xff]
    %1541 = vmatprep.subr.mxu0 %v411
    %1542 = vmatpush1.msra.mxu0 %v410
    %1543 = vmatprep.subr.mxu0 %v415
    %1544 = vmatpush1.msra.mxu0 %v414
    %1545 = vmatprep.subr.mxu0 %v419
    %1546 = vmatpush1.msra.mxu0 %v418
    %1547 = vmatprep.subr.mxu0 %v423
    %1548 = vmatpush1.msra.mxu0 %v422
    %1549 = vmatprep.subr.mxu0 %v427
    %1550 = vmatpush1.msra.mxu0 %v426
    %1551 = vmatprep.subr.mxu0 %v431
    %1552 = vmatpush1.msra.mxu0 %v430
    %1553 = vmatprep.subr.mxu0 %v435
    %1554 = vmatpush1.msra.mxu0 %v434
    %1555 = vmatprep.subr.mxu0 %v439
    %1556 = vmatpush1.msra.mxu0 %v438
    %1557 = vmatprep.subr.mxu0 %v443
    %1558 = vmatpush1.msra.mxu0 %v442
    %1559 = vmatprep.subr.mxu0 %v447
    %1560 = vmatpush1.msra.mxu0 %v446
    %1561 = vmatprep.subr.mxu0 %v451
    %1562 = vmatpush1.msra.mxu0 %v450
    %1563 = vmatprep.subr.mxu0 %v455
    %1564 = vmatpush1.msra.mxu0 %v454
    %1565 = vmatprep.subr.mxu0 %v459
    %1566 = vmatpush1.msra.mxu0 %v458
    %1567 = vmatprep.subr.mxu0 %v463
    %1568 = vmatpush1.msra.mxu0 %v462
    %1569 = vmatprep.subr.mxu0 %v467
    %1570 = vmatpush1.msra.mxu0 %v466
    %1571 = vmatprep.subr.mxu0 %v471
    %1572 = vmatpush1.msra.mxu0 %v470
    %1573 = vmatprep.subr.mxu0 0.0
    %1574 = vmatpush1.msra.mxu0 0.0
    %1575 = vmatprep.subr.mxu0 0.0
    %1576 = vmatpush1.msra.mxu0 0.0
    %1577 = vmatprep.subr.mxu0 0.0
    %1578 = vmatpush1.msra.mxu0 0.0
    %1579 = vmatprep.subr.mxu0 0.0
    %1580 = vmatpush1.msra.mxu0 0.0
    %1581 = vmatprep.subr.mxu0 0.0
    %1582 = vmatpush1.msra.mxu0 0.0
    %1583 = vmatprep.subr.mxu0 0.0
    %1584 = vmatpush1.msra.mxu0 0.0
    %1585 = vmatprep.subr.mxu0 0.0
    %1586 = vmatpush1.msra.mxu0 0.0
    %1587 = vmatprep.subr.mxu0 0.0
    %1588 = vmatpush1.msra.mxu0 0.0
    %1589 = vmatprep.subr.mxu0 0.0
    %1590 = vmatpush1.msra.mxu0 0.0
    %1591 = vmatprep.subr.mxu0 0.0
    %1592 = vmatpush1.msra.mxu0 0.0
    %1593 = vmatprep.subr.mxu0 0.0
    %1594 = vmatpush1.msra.mxu0 0.0
    %1595 = vmatprep.subr.mxu0 0.0
    %1596 = vmatpush1.msra.mxu0 0.0
    %1597 = vmatprep.subr.mxu0 0.0
    %1598 = vmatpush1.msra.mxu0 0.0
    %1599 = vmatprep.subr.mxu0 0.0
    %1600 = vmatpush1.msra.mxu0 0.0
    %1601 = vmatprep.subr.mxu0 0.0
    %1602 = vmatpush1.msra.mxu0 0.0
    %1603 = vmatprep.subr.mxu0 0.0
    %1604 = vmatpush1.msra.mxu0 0.0
    %1605 = vmatprep.mubr.f32.mxu0 0.0
    %1606 = vmatmul.mubr.f32.gmra.mrb[0].mxu0 %v1533
    %v1607 = vpop.f32.mrb[0].mxu0
    %v1608 = vadd.f32 0.0, %v1607
    %v1609 = vpop.f32.mrb[0].mxu0
    %v1610 = vadd.f32 0.0, %v1609
    %1611 = vdwg.mxu0
    %1612 = vmatprep.subr.mxu0 %v413
    %1613 = vmatpush1.msra.mxu0 %v412
    %1614 = vmatprep.subr.mxu0 %v417
    %1615 = vmatpush1.msra.mxu0 %v416
    %1616 = vmatprep.subr.mxu0 %v421
    %1617 = vmatpush1.msra.mxu0 %v420
    %1618 = vmatprep.subr.mxu0 %v425
    %1619 = vmatpush1.msra.mxu0 %v424
    %1620 = vmatprep.subr.mxu0 %v429
    %1621 = vmatpush1.msra.mxu0 %v428
    %1622 = vmatprep.subr.mxu0 %v433
    %1623 = vmatpush1.msra.mxu0 %v432
    %1624 = vmatprep.subr.mxu0 %v437
    %1625 = vmatpush1.msra.mxu0 %v436
    %1626 = vmatprep.subr.mxu0 %v441
    %1627 = vmatpush1.msra.mxu0 %v440
    %1628 = vmatprep.subr.mxu0 %v445
    %1629 = vmatpush1.msra.mxu0 %v444
    %1630 = vmatprep.subr.mxu0 %v449
    %1631 = vmatpush1.msra.mxu0 %v448
    %1632 = vmatprep.subr.mxu0 %v453
    %1633 = vmatpush1.msra.mxu0 %v452
    %1634 = vmatprep.subr.mxu0 %v457
    %1635 = vmatpush1.msra.mxu0 %v456
    %1636 = vmatprep.subr.mxu0 %v461
    %1637 = vmatpush1.msra.mxu0 %v460
    %1638 = vmatprep.subr.mxu0 %v465
    %1639 = vmatpush1.msra.mxu0 %v464
    %1640 = vmatprep.subr.mxu0 %v469
    %1641 = vmatpush1.msra.mxu0 %v468
    %1642 = vmatprep.subr.mxu0 %v473
    %1643 = vmatpush1.msra.mxu0 %v472
    %1644 = vmatprep.subr.mxu0 0.0
    %1645 = vmatpush1.msra.mxu0 0.0
    %1646 = vmatprep.subr.mxu0 0.0
    %1647 = vmatpush1.msra.mxu0 0.0
    %1648 = vmatprep.subr.mxu0 0.0
    %1649 = vmatpush1.msra.mxu0 0.0
    %1650 = vmatprep.subr.mxu0 0.0
    %1651 = vmatpush1.msra.mxu0 0.0
    %1652 = vmatprep.subr.mxu0 0.0
    %1653 = vmatpush1.msra.mxu0 0.0
    %1654 = vmatprep.subr.mxu0 0.0
    %1655 = vmatpush1.msra.mxu0 0.0
    %1656 = vmatprep.subr.mxu0 0.0
    %1657 = vmatpush1.msra.mxu0 0.0
    %1658 = vmatprep.subr.mxu0 0.0
    %1659 = vmatpush1.msra.mxu0 0.0
    %1660 = vmatprep.subr.mxu0 0.0
    %1661 = vmatpush1.msra.mxu0 0.0
    %1662 = vmatprep.subr.mxu0 0.0
    %1663 = vmatpush1.msra.mxu0 0.0
    %1664 = vmatprep.subr.mxu0 0.0
    %1665 = vmatpush1.msra.mxu0 0.0
    %1666 = vmatprep.subr.mxu0 0.0
    %1667 = vmatpush1.msra.mxu0 0.0
    %1668 = vmatprep.subr.mxu0 0.0
    %1669 = vmatpush1.msra.mxu0 0.0
    %1670 = vmatprep.subr.mxu0 0.0
    %1671 = vmatpush1.msra.mxu0 0.0
    %1672 = vmatprep.subr.mxu0 0.0
    %1673 = vmatpush1.msra.mxu0 0.0
    %1674 = vmatprep.subr.mxu0 0.0
    %1675 = vmatpush1.msra.mxu0 0.0
    %1676 = vmatprep.mubr.f32.mxu0 0.0
    %1677 = vmatmul.mubr.f32.gmra.mrb[0].mxu0 %v1533
    %v1678 = vpop.f32.mrb[0].mxu0
    %v1679 = vadd.f32 0.0, %v1678
    %v1680 = vpop.f32.mrb[0].mxu0
    %v1681 = vadd.f32 0.0, %v1680
    %1682 = vdwg.mxu0
    %v1683 = vadd.f32 %v1537, %v1608
    %v1684 = vadd.f32 %v1538, %v1610
    %v1685 = vadd.f32 %v1539, %v1679
    %v1686 = vadd.f32 %v1540, %v1681
    %v1687 = vxor.u32 %v1683, 2147483648
    %v1688 = vmul.f32 %v1687, 1.442695
    %v1689 = vpow.pop %v1688
    %v1690 = vadd.f32 %v1689, 1.0
    %v1691 = vrcp.pop %v1690
    %v1692 = vmul.f32 1.0, %v1691
    %v1693 = vxor.u32 %v1684, 2147483648
    %v1694 = vmul.f32 %v1693, 1.442695
    %v1695 = vpow.pop %v1694
    %v1696 = vadd.f32 %v1695, 1.0
    %v1697 = vrcp.pop %v1696
    %v1698 = vmul.f32 1.0, %v1697
    %v1699 = vtanh.pop %v1685
    %v1700 = vxor.u32 %v1686, 2147483648
    %v1701 = vmul.f32 %v1700, 1.442695
    %v1702 = vpow.pop %v1701
    %v1703 = vadd.f32 %v1702, 1.0
    %v1704 = vrcp.pop %v1703
    %v1705 = vmul.f32 1.0, %v1704
    %v1706 = vmul.f32 %v1698, %v1531
    %v1707 = vmul.f32 %v1692, %v1699
    %v1708 = vadd.f32 %v1706, %v1707
    %v1709 = vtanh.pop %v1708
    %v1710 = vmul.f32 %v1705, %v1709
    %s1711 = scalar_lea.vmem [#allocation13], 48
    %1712 = vst [vmem:[%s1711] sm:$0xff] %v1710
    %s1713 = scalar_lea.vmem [#allocation2], 224
    %v1714 = vld [vmem:[%s1713] sm:$0xff]
    %v1715 = vld [vmem:[%s1713 + $0x8] sm:$0xff]
    %v1716 = vld [vmem:[%s1713 + $0x10] sm:$0xff]
    %v1717 = vld [vmem:[%s1713 + $0x18] sm:$0xff]
    %1718 = vmatprep.subr.mxu0 %v411
    %1719 = vmatpush1.msra.mxu0 %v410
    %1720 = vmatprep.subr.mxu0 %v415
    %1721 = vmatpush1.msra.mxu0 %v414
    %1722 = vmatprep.subr.mxu0 %v419
    %1723 = vmatpush1.msra.mxu0 %v418
    %1724 = vmatprep.subr.mxu0 %v423
    %1725 = vmatpush1.msra.mxu0 %v422
    %1726 = vmatprep.subr.mxu0 %v427
    %1727 = vmatpush1.msra.mxu0 %v426
    %1728 = vmatprep.subr.mxu0 %v431
    %1729 = vmatpush1.msra.mxu0 %v430
    %1730 = vmatprep.subr.mxu0 %v435
    %1731 = vmatpush1.msra.mxu0 %v434
    %1732 = vmatprep.subr.mxu0 %v439
    %1733 = vmatpush1.msra.mxu0 %v438
    %1734 = vmatprep.subr.mxu0 %v443
    %1735 = vmatpush1.msra.mxu0 %v442
    %1736 = vmatprep.subr.mxu0 %v447
    %1737 = vmatpush1.msra.mxu0 %v446
    %1738 = vmatprep.subr.mxu0 %v451
    %1739 = vmatpush1.msra.mxu0 %v450
    %1740 = vmatprep.subr.mxu0 %v455
    %1741 = vmatpush1.msra.mxu0 %v454
    %1742 = vmatprep.subr.mxu0 %v459
    %1743 = vmatpush1.msra.mxu0 %v458
    %1744 = vmatprep.subr.mxu0 %v463
    %1745 = vmatpush1.msra.mxu0 %v462
    %1746 = vmatprep.subr.mxu0 %v467
    %1747 = vmatpush1.msra.mxu0 %v466
    %1748 = vmatprep.subr.mxu0 %v471
    %1749 = vmatpush1.msra.mxu0 %v470
    %1750 = vmatprep.subr.mxu0 0.0
    %1751 = vmatpush1.msra.mxu0 0.0
    %1752 = vmatprep.subr.mxu0 0.0
    %1753 = vmatpush1.msra.mxu0 0.0
    %1754 = vmatprep.subr.mxu0 0.0
    %1755 = vmatpush1.msra.mxu0 0.0
    %1756 = vmatprep.subr.mxu0 0.0
    %1757 = vmatpush1.msra.mxu0 0.0
    %1758 = vmatprep.subr.mxu0 0.0
    %1759 = vmatpush1.msra.mxu0 0.0
    %1760 = vmatprep.subr.mxu0 0.0
    %1761 = vmatpush1.msra.mxu0 0.0
    %1762 = vmatprep.subr.mxu0 0.0
    %1763 = vmatpush1.msra.mxu0 0.0
    %1764 = vmatprep.subr.mxu0 0.0
    %1765 = vmatpush1.msra.mxu0 0.0
    %1766 = vmatprep.subr.mxu0 0.0
    %1767 = vmatpush1.msra.mxu0 0.0
    %1768 = vmatprep.subr.mxu0 0.0
    %1769 = vmatpush1.msra.mxu0 0.0
    %1770 = vmatprep.subr.mxu0 0.0
    %1771 = vmatpush1.msra.mxu0 0.0
    %1772 = vmatprep.subr.mxu0 0.0
    %1773 = vmatpush1.msra.mxu0 0.0
    %1774 = vmatprep.subr.mxu0 0.0
    %1775 = vmatpush1.msra.mxu0 0.0
    %1776 = vmatprep.subr.mxu0 0.0
    %1777 = vmatpush1.msra.mxu0 0.0
    %1778 = vmatprep.subr.mxu0 0.0
    %1779 = vmatpush1.msra.mxu0 0.0
    %1780 = vmatprep.subr.mxu0 0.0
    %1781 = vmatpush1.msra.mxu0 0.0
    %1782 = vmatprep.mubr.f32.mxu0 0.0
    %1783 = vmatmul.mubr.f32.gmra.mrb[0].mxu0 %v1710
    %v1784 = vpop.f32.mrb[0].mxu0
    %v1785 = vadd.f32 0.0, %v1784
    %v1786 = vpop.f32.mrb[0].mxu0
    %v1787 = vadd.f32 0.0, %v1786
    %1788 = vdwg.mxu0
    %1789 = vmatprep.subr.mxu0 %v413
    %1790 = vmatpush1.msra.mxu0 %v412
    %1791 = vmatprep.subr.mxu0 %v417
    %1792 = vmatpush1.msra.mxu0 %v416
    %1793 = vmatprep.subr.mxu0 %v421
    %1794 = vmatpush1.msra.mxu0 %v420
    %1795 = vmatprep.subr.mxu0 %v425
    %1796 = vmatpush1.msra.mxu0 %v424
    %1797 = vmatprep.subr.mxu0 %v429
    %1798 = vmatpush1.msra.mxu0 %v428
    %1799 = vmatprep.subr.mxu0 %v433
    %1800 = vmatpush1.msra.mxu0 %v432
    %1801 = vmatprep.subr.mxu0 %v437
    %1802 = vmatpush1.msra.mxu0 %v436
    %1803 = vmatprep.subr.mxu0 %v441
    %1804 = vmatpush1.msra.mxu0 %v440
    %1805 = vmatprep.subr.mxu0 %v445
    %1806 = vmatpush1.msra.mxu0 %v444
    %1807 = vmatprep.subr.mxu0 %v449
    %1808 = vmatpush1.msra.mxu0 %v448
    %1809 = vmatprep.subr.mxu0 %v453
    %1810 = vmatpush1.msra.mxu0 %v452
    %1811 = vmatprep.subr.mxu0 %v457
    %1812 = vmatpush1.msra.mxu0 %v456
    %1813 = vmatprep.subr.mxu0 %v461
    %1814 = vmatpush1.msra.mxu0 %v460
    %1815 = vmatprep.subr.mxu0 %v465
    %1816 = vmatpush1.msra.mxu0 %v464
    %1817 = vmatprep.subr.mxu0 %v469
    %1818 = vmatpush1.msra.mxu0 %v468
    %1819 = vmatprep.subr.mxu0 %v473
    %1820 = vmatpush1.msra.mxu0 %v472
    %1821 = vmatprep.subr.mxu0 0.0
    %1822 = vmatpush1.msra.mxu0 0.0
    %1823 = vmatprep.subr.mxu0 0.0
    %1824 = vmatpush1.msra.mxu0 0.0
    %1825 = vmatprep.subr.mxu0 0.0
    %1826 = vmatpush1.msra.mxu0 0.0
    %1827 = vmatprep.subr.mxu0 0.0
    %1828 = vmatpush1.msra.mxu0 0.0
    %1829 = vmatprep.subr.mxu0 0.0
    %1830 = vmatpush1.msra.mxu0 0.0
    %1831 = vmatprep.subr.mxu0 0.0
    %1832 = vmatpush1.msra.mxu0 0.0
    %1833 = vmatprep.subr.mxu0 0.0
    %1834 = vmatpush1.msra.mxu0 0.0
    %1835 = vmatprep.subr.mxu0 0.0
    %1836 = vmatpush1.msra.mxu0 0.0
    %1837 = vmatprep.subr.mxu0 0.0
    %1838 = vmatpush1.msra.mxu0 0.0
    %1839 = vmatprep.subr.mxu0 0.0
    %1840 = vmatpush1.msra.mxu0 0.0
    %1841 = vmatprep.subr.mxu0 0.0
    %1842 = vmatpush1.msra.mxu0 0.0
    %1843 = vmatprep.subr.mxu0 0.0
    %1844 = vmatpush1.msra.mxu0 0.0
    %1845 = vmatprep.subr.mxu0 0.0
    %1846 = vmatpush1.msra.mxu0 0.0
    %1847 = vmatprep.subr.mxu0 0.0
    %1848 = vmatpush1.msra.mxu0 0.0
    %1849 = vmatprep.subr.mxu0 0.0
    %1850 = vmatpush1.msra.mxu0 0.0
    %1851 = vmatprep.subr.mxu0 0.0
    %1852 = vmatpush1.msra.mxu0 0.0
    %1853 = vmatprep.mubr.f32.mxu0 0.0
    %1854 = vmatmul.mubr.f32.gmra.mrb[0].mxu0 %v1710
    %v1855 = vpop.f32.mrb[0].mxu0
    %v1856 = vadd.f32 0.0, %v1855
    %v1857 = vpop.f32.mrb[0].mxu0
    %v1858 = vadd.f32 0.0, %v1857
    %1859 = vdwg.mxu0
    %v1860 = vadd.f32 %v1714, %v1785
    %v1861 = vadd.f32 %v1715, %v1787
    %v1862 = vadd.f32 %v1716, %v1856
    %v1863 = vadd.f32 %v1717, %v1858
    %v1864 = vxor.u32 %v1860, 2147483648
    %v1865 = vmul.f32 %v1864, 1.442695
    %v1866 = vpow.pop %v1865
    %v1867 = vadd.f32 %v1866, 1.0
    %v1868 = vrcp.pop %v1867
    %v1869 = vmul.f32 1.0, %v1868
    %v1870 = vxor.u32 %v1861, 2147483648
    %v1871 = vmul.f32 %v1870, 1.442695
    %v1872 = vpow.pop %v1871
    %v1873 = vadd.f32 %v1872, 1.0
    %v1874 = vrcp.pop %v1873
    %v1875 = vmul.f32 1.0, %v1874
    %v1876 = vtanh.pop %v1862
    %v1877 = vxor.u32 %v1863, 2147483648
    %v1878 = vmul.f32 %v1877, 1.442695
    %v1879 = vpow.pop %v1878
    %v1880 = vadd.f32 %v1879, 1.0
    %v1881 = vrcp.pop %v1880
    %v1882 = vmul.f32 1.0, %v1881
    %v1883 = vmul.f32 %v1875, %v1708
    %v1884 = vmul.f32 %v1869, %v1876
    %v1885 = vadd.f32 %v1883, %v1884
    %v1886 = vtanh.pop %v1885
    %v1887 = vmul.f32 %v1882, %v1886
    %s1888 = scalar_lea.vmem [#allocation13], 56
    %1889 = vst [vmem:[%s1888] sm:$0xff] %v1887
    %1890 = vst [vmem:[#allocation3] sm:$0xff] %v1887
    %1891 = vst [vmem:[#allocation4] sm:$0xff] %v1885
    // Predicated region
    $region46: #{tpu_custom_call.1} parent=1 // pred_check
      %p1892 = pneg %p81
    $region47: #{tpu_custom_call.1} parent=1 // pred_check_branch
      %1894 = sbr.rel (%p1892) target = $region49
    $region48: #{tpu_custom_call.1} parent=1 // pred_region
      %1895 = vst [vmem:[#allocation14] sm:$0xff] %v1887
      %1896 = vst [vmem:[#allocation16] sm:$0xff] %v1885
    $region49: #{tpu_custom_call.1} parent=1 // pred_fallthru
      _
    // Predicated region
    $region50: #{tpu_custom_call.1} parent=1 // pred_check
      _
    $region51: #{tpu_custom_call.1} parent=1 // pred_check_branch
      %1898 = sbr.rel (0) target = $region53
    $region52: #{tpu_custom_call.1} parent=1 // pred_region
      %s1900 = ssub.s32 1024, 1024
      %1901 = vsyncadd [#allocation7], %s1900
      %s1902 = sshll.u32 [#allocation13], 4
      %s1903 = int_to_ptr.vmem [resolvable:$true] %s1902
      %1908 = dma.vmem_to_hbm [thread:$0]  %s1903, 1024, %s6, [#allocation7], 128, 128, 8
    $region53: #{tpu_custom_call.1} parent=1 // pred_fallthru
      _
    // Predicated region
    $region54: #{tpu_custom_call.1} parent=1 // pred_check
      _
    $region55: #{tpu_custom_call.1} parent=1 // pred_check_branch
      %1910 = sbr.rel (0) target = $region57
    $region56: #{tpu_custom_call.1} parent=1 // pred_region
      %s1912 = ssub.s32 128, 128
      %1913 = vsyncadd [#allocation15], %s1912
      %s1915 = sshll.u32 [#allocation14], 4
      %s1916 = int_to_ptr.vmem [resolvable:$true] %s1915
      %1918 = dma.vmem_to_hbm [thread:$0]  %s1916, 128, %s7, [#allocation15]
    $region57: #{tpu_custom_call.1} parent=1 // pred_fallthru
      _
    // Predicated region
    $region58: #{tpu_custom_call.1} parent=1 // pred_check
      _
    $region59: #{tpu_custom_call.1} parent=1 // pred_check_branch
      %1920 = sbr.rel (0) target = $region61
    $region60: #{tpu_custom_call.1} parent=1 // pred_region
      %s1922 = ssub.s32 128, 128
      %1923 = vsyncadd [#allocation15], %s1922
      %s1925 = sshll.u32 [#allocation16], 4
      %s1926 = int_to_ptr.vmem [resolvable:$true] %s1925
      %1928 = dma.vmem_to_hbm [thread:$0]  %s1926, 128, %s8, [#allocation15]
    $region61: #{tpu_custom_call.1} parent=1 // pred_fallthru
      _
    // Predicated region
    $region62: #{tpu_custom_call.1} parent=1 // pred_check
      _
    $region63: #{tpu_custom_call.1} parent=1 // pred_check_branch
      %1930 = sbr.rel (0) target = $region65
    $region64: #{tpu_custom_call.1} parent=1 // pred_region
      %1931 = dma.done [#allocation7], 1024
    $region65: #{tpu_custom_call.1} parent=1 // pred_fallthru
      _
    // Predicated region
    $region66: #{tpu_custom_call.1} parent=1 // pred_check
      _
    $region67: #{tpu_custom_call.1} parent=1 // pred_check_branch
      %1933 = sbr.rel (0) target = $region69
    $region68: #{tpu_custom_call.1} parent=1 // pred_region
      %1934 = dma.done [#allocation15], 128
    $region69: #{tpu_custom_call.1} parent=1 // pred_fallthru
      _
    // Predicated region
    $region70: #{tpu_custom_call.1} parent=1 // pred_check
      _
    $region71: #{tpu_custom_call.1} parent=1 // pred_check_branch
      %1936 = sbr.rel (0) target = $region73
    $region72: #{tpu_custom_call.1} parent=1 // pred_region
      %1937 = dma.done [#allocation15], 128
    $region73: #{tpu_custom_call.1} parent=1 // pred_fallthru
      _
    %1938 = vsyncpa [#allocation6], 1
    %1939 = vsyncpa [#allocation9], 1
    %1940 = vsyncpa [#allocation12], 1
    %1941 = vsyncpa [#allocation7], 1
    %1942 = vsyncpa [#allocation15], 1

</llo_original>
